<compile_context>
chip_gen: v5e
topology: v5e:2x2
jax: 0.10.0
libtpu: 0.0.40
codegen_flags: <defaults>
</compile_context>

<pallas_src>
import jax
import jax.numpy as jnp
from jax.experimental import pallas as pl
from jax.experimental.pallas import tpu as pltpu

LANE = 128  # TPU lane width; latent dim is padded up to this.


def shared_ae_kernel(
    x_ref,
    w1_ref, b1_ref,   # encoder layer 1: input_dim   -> hidden_dim
    w2_ref, b2_ref,   # encoder layer 2: hidden_dim  -> latent_pad
    w3_ref, b3_ref,   # decoder layer 1: latent_pad  -> hidden_dim
    w4_ref, b4_ref,   # decoder layer 2: hidden_dim  -> input_dim
    recon_ref, z_ref,
):
    w_dtype = w1_ref.dtype
    # In-kernel cast to the MXU dtype (no wrapper-side pre-cast / extra HBM pass).
    x = x_ref[...].astype(w_dtype)                   # [TB, input_dim] bf16

    # ---- encoder ---- (MXU in bf16, f32 accumulation; bias+ReLU in f32)
    h = jnp.dot(x, w1_ref[...], preferred_element_type=jnp.float32) + b1_ref[...]
    h = jnp.maximum(h, 0.0)
    z = jnp.dot(h.astype(w_dtype), w2_ref[...],
                preferred_element_type=jnp.float32) + b2_ref[...]
    z = jnp.maximum(z, 0.0)                          # padded lanes stay exactly 0

    # ---- decoder ----
    d = jnp.dot(z.astype(w_dtype), w3_ref[...],
                preferred_element_type=jnp.float32) + b3_ref[...]
    d = jnp.maximum(d, 0.0)
    recon = jnp.dot(d.astype(w_dtype), w4_ref[...],
                    preferred_element_type=jnp.float32) + b4_ref[...]

    recon_ref[...] = recon.astype(recon_ref.dtype)
    z_ref[...] = z.astype(z_ref.dtype)


def _pick_block_batch(batch):
    """Choose a batch tile: up to 512 rows, but keep >= 2 grid tiles when the
    batch allows so v7x's two TensorCores both get work (no-op on v5e/v6e)."""
    cdiv = lambda a, b: -(-a // b)          # noqa: E731
    round_up = lambda a, b: cdiv(a, b) * b  # noqa: E731
    if batch <= 128:
        return round_up(max(batch, 8), 8)   # single small tile
    if batch <= 1024:
        return round_up(cdiv(batch, 2), 128)  # exactly 2 tiles, 128..512 rows each
    return 512                               # large batches: 512-row tiles, >=3 tiles


def shared_autoencoder_forward(x, params, *, block_batch=None,
                               out_dtype=jnp.bfloat16):
    """Fused autoencoder forward.

    x: [batch, input_dim], any float dtype (cast to bf16 inside the kernel).
    params: padded/cast params (see pad_and_cast_params); weights [in, out] bf16,
            biases [1, out] f32; latent side already padded to LANE.
    Returns (recon [batch, input_dim], z_padded [batch, latent_pad]) in
    `out_dtype`.  z is returned lane-padded (latent_pad columns); slice
    z[:, :latent_dim] lazily at the point of use.
    """
    batch, input_dim = x.shape
    hidden_dim = params["w1"].shape[1]
    latent_pad = params["w2"].shape[1]

    tb = block_batch if block_batch is not None else _pick_block_batch(batch)
    num_tiles = -(-batch // tb)
    batch_pad = num_tiles * tb

    x_in = x
    if batch_pad != batch:
        x_in = jnp.pad(x_in, ((0, batch_pad - batch), (0, 0)))

    args = (
        x_in,
        params["w1"], params["b1"],
        params["w2"], params["b2"],
        params["w3"], params["b3"],
        params["w4"], params["b4"],
    )

    # Batch-tiled activations/outputs; weights & biases use a constant block
    # index so they are fetched once and stay resident in VMEM across tiles.
    batch_map = lambda i: (i, 0)      # noqa: E731
    const_map = lambda i: (0, 0)      # noqa: E731

    in_specs = [
        pl.BlockSpec((tb, input_dim), batch_map),               # x (native dtype)
        pl.BlockSpec((input_dim, hidden_dim), const_map),       # w1
        pl.BlockSpec((1, hidden_dim), const_map),               # b1
        pl.BlockSpec((hidden_dim, latent_pad), const_map),      # w2
        pl.BlockSpec((1, latent_pad), const_map),               # b2
        pl.BlockSpec((latent_pad, hidden_dim), const_map),      # w3
        pl.BlockSpec((1, hidden_dim), const_map),               # b3
        pl.BlockSpec((hidden_dim, input_dim), const_map),       # w4
        pl.BlockSpec((1, input_dim), const_map),                # b4
    ]
    out_specs = (
        pl.BlockSpec((tb, input_dim), batch_map),               # recon
        pl.BlockSpec((tb, latent_pad), batch_map),              # z (lane-padded)
    )

    flops = 2 * batch_pad * (
        input_dim * hidden_dim + hidden_dim * latent_pad
        + latent_pad * hidden_dim + hidden_dim * input_dim
    )
    out_itemsize = jnp.dtype(out_dtype).itemsize
    bytes_accessed = sum(int(a.size) * a.dtype.itemsize for a in args) \
        + batch_pad * (input_dim + latent_pad) * out_itemsize

    recon, z_pad = pl.pallas_call(
        shared_ae_kernel,
        out_shape=(
            jax.ShapeDtypeStruct((batch_pad, input_dim), out_dtype),
            jax.ShapeDtypeStruct((batch_pad, latent_pad), out_dtype),
        ),
        grid=(num_tiles,),
        in_specs=in_specs,
        out_specs=out_specs,
        compiler_params=pltpu.CompilerParams(
            dimension_semantics=("parallel",),
        ),
        cost_estimate=pl.CostEstimate(
            flops=flops, transcendentals=0, bytes_accessed=bytes_accessed
        ),
    )(*args)

    if batch_pad != batch:
        recon = recon[:batch]
        z_pad = z_pad[:batch]
    return recon, z_pad


def init_params(key, input_dim, hidden_dim, latent_dim):
    """nn.Linear-style U(-1/sqrt(fan_in), 1/sqrt(fan_in)) init, f32.

    Weights stored as [in_features, out_features]; biases as [1, out_features].
    """
    dims = [
        (input_dim, hidden_dim),   # encoder.0
        (hidden_dim, latent_dim),  # encoder.2
        (latent_dim, hidden_dim),  # decoder.0
        (hidden_dim, input_dim),   # decoder.2
    ]
    params = {}
    keys = jax.random.split(key, 2 * len(dims))
    for i, (fan_in, fan_out) in enumerate(dims):
        bound = 1.0 / jnp.sqrt(jnp.float32(fan_in))
        params[f"w{i + 1}"] = jax.random.uniform(
            keys[2 * i], (fan_in, fan_out), jnp.float32, -bound, bound
        )
        params[f"b{i + 1}"] = jax.random.uniform(
            keys[2 * i + 1], (1, fan_out), jnp.float32, -bound, bound
        )
    return params


def pad_and_cast_params(params, latent_dim, weight_dtype=jnp.bfloat16):
    """Zero-pad the latent side to a full lane width and cast weights.

    Padding with zeros is exact: padded z lanes are ReLU(0 + 0) = 0 and padded
    w3 rows contribute nothing to the decoder.
    """
    latent_pad = max(LANE, -(-latent_dim // LANE) * LANE)
    pad_n = latent_pad - latent_dim
    p = dict(params)
    if pad_n:
        p["w2"] = jnp.pad(p["w2"], ((0, 0), (0, pad_n)))
        p["b2"] = jnp.pad(p["b2"], ((0, 0), (0, pad_n)))
        p["w3"] = jnp.pad(p["w3"], ((0, pad_n), (0, 0)))
    for i in range(1, 5):
        p[f"w{i}"] = p[f"w{i}"].astype(weight_dtype)   # MXU inputs in bf16
        p[f"b{i}"] = p[f"b{i}"].astype(jnp.float32)    # bias/ReLU stay f32
    return p


def reference_forward(x, p, latent_dim):
    """Plain-JAX reference with the same bf16-input / f32-accumulate numerics."""
    wdt = p["w1"].dtype
    h = jnp.maximum(
        jnp.dot(x.astype(wdt), p["w1"], preferred_element_type=jnp.float32)
        + p["b1"], 0.0)
    z = jnp.maximum(
        jnp.dot(h.astype(wdt), p["w2"], preferred_element_type=jnp.float32)
        + p["b2"], 0.0)
    d = jnp.maximum(
        jnp.dot(z.astype(wdt), p["w3"], preferred_element_type=jnp.float32)
        + p["b3"], 0.0)
    recon = jnp.dot(d.astype(wdt), p["w4"],
                    preferred_element_type=jnp.float32) + p["b4"]
    return recon, z[:, :latent_dim]


if __name__ == "__main__":
    # Module-consistent shapes: 768-d embeddings, hidden=128, latent=96.
    # batch=256 -> the tile picker chooses 2 tiles of 128 (exercises the
    # parallel grid axis / v7x megacore path).
    batch, input_dim, hidden_dim, latent_dim = 256, 768, 128, 96

    key = jax.random.PRNGKey(0)
    k_x, k_p = jax.random.split(key)
    x = jax.random.normal(k_x, (batch, input_dim), jnp.float32)

    params_f32 = init_params(k_p, input_dim, hidden_dim, latent_dim)
    params = pad_and_cast_params(params_f32, latent_dim, jnp.bfloat16)

    recon, z_pad = shared_autoencoder_forward(x, params)
    jax.block_until_ready((recon, z_pad))

    # Slice the lane-padded latent lazily at the point of use.
    z = z_pad[:, :latent_dim]

    recon_ref, z_ref = reference_forward(x, params, latent_dim)
    assert recon.shape == (batch, input_dim) and z.shape == (batch, latent_dim)
    # Outputs are stored in bf16 (perf feedback); tolerance reflects bf16 rounding.
    assert jnp.allclose(recon.astype(jnp.float32), recon_ref, atol=5e-2, rtol=5e-2)
    assert jnp.allclose(z.astype(jnp.float32), z_ref, atol=5e-2, rtol=5e-2)
    # Padded latent lanes must be exactly zero.
    assert jnp.all(z_pad[:, latent_dim:] == 0)

    print("KERNEL_OK")
</pallas_src>

<mosaic_0001>
module attributes {stable_mosaic.version = 11 : i64} {
  func.func @shared_ae_kernel(%arg0: i32, %arg1: memref<128x768xf32, #tpu.memory_space<vmem>>, %arg2: memref<768x128xbf16, #tpu.memory_space<vmem>>, %arg3: memref<1x128xf32, #tpu.memory_space<vmem>>, %arg4: memref<128x128xbf16, #tpu.memory_space<vmem>>, %arg5: memref<1x128xf32, #tpu.memory_space<vmem>>, %arg6: memref<128x128xbf16, #tpu.memory_space<vmem>>, %arg7: memref<1x128xf32, #tpu.memory_space<vmem>>, %arg8: memref<128x768xbf16, #tpu.memory_space<vmem>>, %arg9: memref<1x768xf32, #tpu.memory_space<vmem>>, %arg10: memref<128x768xbf16, #tpu.memory_space<vmem>>, %arg11: memref<128x128xbf16, #tpu.memory_space<vmem>>) attributes {dimension_semantics = [#tpu.dimension_semantics<parallel>], iteration_bounds = array<i64: 2>, scalar_prefetch = 0 : i64, scratch_operands = 0 : i64, tpu.core_type = #tpu.core_type<tc>, window_params = [{transform_indices = @transform_0, window_bounds = array<i64: 128, 768>}, {pipeline_mode = #tpu.pipeline_mode<synchronous>, transform_indices = @transform_1, window_bounds = array<i64: 768, 128>}, {pipeline_mode = #tpu.pipeline_mode<synchronous>, transform_indices = @transform_2, window_bounds = array<i64: 1, 128>}, {pipeline_mode = #tpu.pipeline_mode<synchronous>, transform_indices = @transform_3, window_bounds = array<i64: 128, 128>}, {pipeline_mode = #tpu.pipeline_mode<synchronous>, transform_indices = @transform_4, window_bounds = array<i64: 1, 128>}, {pipeline_mode = #tpu.pipeline_mode<synchronous>, transform_indices = @transform_5, window_bounds = array<i64: 128, 128>}, {pipeline_mode = #tpu.pipeline_mode<synchronous>, transform_indices = @transform_6, window_bounds = array<i64: 1, 128>}, {pipeline_mode = #tpu.pipeline_mode<synchronous>, transform_indices = @transform_7, window_bounds = array<i64: 128, 768>}, {pipeline_mode = #tpu.pipeline_mode<synchronous>, transform_indices = @transform_8, window_bounds = array<i64: 1, 768>}, {transform_indices = @transform_9, window_bounds = array<i64: 128, 768>}, {transform_indices = @transform_10, window_bounds = array<i64: 128, 128>}]} {
    %c0 = arith.constant 0 : index
    %c0_0 = arith.constant 0 : index
    %0 = vector.load %arg1[%c0, %c0_0] : memref<128x768xf32, #tpu.memory_space<vmem>>, vector<128x768xf32>
    %1 = arith.truncf %0 : vector<128x768xf32> to vector<128x768xbf16>
    %c0_1 = arith.constant 0 : index
    %c0_2 = arith.constant 0 : index
    %2 = vector.load %arg2[%c0_1, %c0_2] : memref<768x128xbf16, #tpu.memory_space<vmem>>, vector<768x128xbf16>
    %cst = arith.constant dense<0.000000e+00> : vector<128x128xf32>
    %3 = tpu.matmul %1, %2, %cst {dimension_numbers = #tpu.dot_dimension_numbers<[1], [0], [0], [1], [0, 0, 1, 1], [], []>} : vector<128x768xbf16>, vector<768x128xbf16>, vector<128x128xf32> -> vector<128x128xf32>
    %c0_3 = arith.constant 0 : index
    %c0_4 = arith.constant 0 : index
    %4 = vector.load %arg3[%c0_3, %c0_4] : memref<1x128xf32, #tpu.memory_space<vmem>>, vector<1x128xf32>
    %5 = vector.broadcast %4 : vector<1x128xf32> to vector<128x128xf32>
    %6 = arith.addf %3, %5 : vector<128x128xf32>
    %cst_5 = arith.constant 0.000000e+00 : f32
    %7 = vector.broadcast %cst_5 : f32 to vector<128x128xf32>
    %8 = arith.maximumf %6, %7 : vector<128x128xf32>
    %9 = arith.truncf %8 : vector<128x128xf32> to vector<128x128xbf16>
    %c0_6 = arith.constant 0 : index
    %c0_7 = arith.constant 0 : index
    %10 = vector.load %arg4[%c0_6, %c0_7] : memref<128x128xbf16, #tpu.memory_space<vmem>>, vector<128x128xbf16>
    %cst_8 = arith.constant dense<0.000000e+00> : vector<128x128xf32>
    %11 = tpu.matmul %9, %10, %cst_8 {dimension_numbers = #tpu.dot_dimension_numbers<[1], [0], [0], [1], [0, 0, 1, 1], [], []>} : vector<128x128xbf16>, vector<128x128xbf16>, vector<128x128xf32> -> vector<128x128xf32>
    %c0_9 = arith.constant 0 : index
    %c0_10 = arith.constant 0 : index
    %12 = vector.load %arg5[%c0_9, %c0_10] : memref<1x128xf32, #tpu.memory_space<vmem>>, vector<1x128xf32>
    %13 = vector.broadcast %12 : vector<1x128xf32> to vector<128x128xf32>
    %14 = arith.addf %11, %13 : vector<128x128xf32>
    %cst_11 = arith.constant 0.000000e+00 : f32
    %15 = vector.broadcast %cst_11 : f32 to vector<128x128xf32>
    %16 = arith.maximumf %14, %15 : vector<128x128xf32>
    %17 = arith.truncf %16 : vector<128x128xf32> to vector<128x128xbf16>
    %c0_12 = arith.constant 0 : index
    %c0_13 = arith.constant 0 : index
    %18 = vector.load %arg6[%c0_12, %c0_13] : memref<128x128xbf16, #tpu.memory_space<vmem>>, vector<128x128xbf16>
    %cst_14 = arith.constant dense<0.000000e+00> : vector<128x128xf32>
    %19 = tpu.matmul %17, %18, %cst_14 {dimension_numbers = #tpu.dot_dimension_numbers<[1], [0], [0], [1], [0, 0, 1, 1], [], []>} : vector<128x128xbf16>, vector<128x128xbf16>, vector<128x128xf32> -> vector<128x128xf32>
    %c0_15 = arith.constant 0 : index
    %c0_16 = arith.constant 0 : index
    %20 = vector.load %arg7[%c0_15, %c0_16] : memref<1x128xf32, #tpu.memory_space<vmem>>, vector<1x128xf32>
    %21 = vector.broadcast %20 : vector<1x128xf32> to vector<128x128xf32>
    %22 = arith.addf %19, %21 : vector<128x128xf32>
    %cst_17 = arith.constant 0.000000e+00 : f32
    %23 = vector.broadcast %cst_17 : f32 to vector<128x128xf32>
    %24 = arith.maximumf %22, %23 : vector<128x128xf32>
    %25 = arith.truncf %24 : vector<128x128xf32> to vector<128x128xbf16>
    %c0_18 = arith.constant 0 : index
    %c0_19 = arith.constant 0 : index
    %26 = vector.load %arg8[%c0_18, %c0_19] : memref<128x768xbf16, #tpu.memory_space<vmem>>, vector<128x768xbf16>
    %cst_20 = arith.constant dense<0.000000e+00> : vector<128x768xf32>
    %27 = tpu.matmul %25, %26, %cst_20 {dimension_numbers = #tpu.dot_dimension_numbers<[1], [0], [0], [1], [0, 0, 1, 1], [], []>} : vector<128x128xbf16>, vector<128x768xbf16>, vector<128x768xf32> -> vector<128x768xf32>
    %c0_21 = arith.constant 0 : index
    %c0_22 = arith.constant 0 : index
    %28 = vector.load %arg9[%c0_21, %c0_22] : memref<1x768xf32, #tpu.memory_space<vmem>>, vector<1x768xf32>
    %29 = vector.broadcast %28 : vector<1x768xf32> to vector<128x768xf32>
    %30 = arith.addf %27, %29 : vector<128x768xf32>
    %31 = arith.truncf %30 : vector<128x768xf32> to vector<128x768xbf16>
    %c0_23 = arith.constant 0 : index
    %c0_24 = arith.constant 0 : index
    %32 = vector.load %arg10[%c0_23, %c0_24] : memref<128x768xbf16, #tpu.memory_space<vmem>>, vector<128x768xbf16>
    tpu.vector_store %arg10[%c0_23, %c0_24], %31 {strides = array<i32>} : memref<128x768xbf16, #tpu.memory_space<vmem>>, vector<128x768xbf16>,
    %33 = arith.truncf %16 : vector<128x128xf32> to vector<128x128xbf16>
    %c0_25 = arith.constant 0 : index
    %c0_26 = arith.constant 0 : index
    %34 = vector.load %arg11[%c0_25, %c0_26] : memref<128x128xbf16, #tpu.memory_space<vmem>>, vector<128x128xbf16>
    tpu.vector_store %arg11[%c0_25, %c0_26], %33 {strides = array<i32>} : memref<128x128xbf16, #tpu.memory_space<vmem>>, vector<128x128xbf16>,
    return
  }
  func.func @transform_0(%arg0: i32) -> (i32, i32) {
    %c0_i32 = arith.constant 0 : i32
    %c0_i32_0 = arith.constant 0 : i32
    return %arg0, %c0_i32 : i32, i32
  }
  func.func @transform_1(%arg0: i32) -> (i32, i32) {
    %c0_i32 = arith.constant 0 : i32
    %c0_i32_0 = arith.constant 0 : i32
    %c0_i32_1 = arith.constant 0 : i32
    return %c0_i32, %c0_i32_0 : i32, i32
  }
  func.func @transform_2(%arg0: i32) -> (i32, i32) {
    %c0_i32 = arith.constant 0 : i32
    %c0_i32_0 = arith.constant 0 : i32
    %c0_i32_1 = arith.constant 0 : i32
    return %c0_i32, %c0_i32_0 : i32, i32
  }
  func.func @transform_3(%arg0: i32) -> (i32, i32) {
    %c0_i32 = arith.constant 0 : i32
    %c0_i32_0 = arith.constant 0 : i32
    %c0_i32_1 = arith.constant 0 : i32
    return %c0_i32, %c0_i32_0 : i32, i32
  }
  func.func @transform_4(%arg0: i32) -> (i32, i32) {
    %c0_i32 = arith.constant 0 : i32
    %c0_i32_0 = arith.constant 0 : i32
    %c0_i32_1 = arith.constant 0 : i32
    return %c0_i32, %c0_i32_0 : i32, i32
  }
  func.func @transform_5(%arg0: i32) -> (i32, i32) {
    %c0_i32 = arith.constant 0 : i32
    %c0_i32_0 = arith.constant 0 : i32
    %c0_i32_1 = arith.constant 0 : i32
    return %c0_i32, %c0_i32_0 : i32, i32
  }
  func.func @transform_6(%arg0: i32) -> (i32, i32) {
    %c0_i32 = arith.constant 0 : i32
    %c0_i32_0 = arith.constant 0 : i32
    %c0_i32_1 = arith.constant 0 : i32
    return %c0_i32, %c0_i32_0 : i32, i32
  }
  func.func @transform_7(%arg0: i32) -> (i32, i32) {
    %c0_i32 = arith.constant 0 : i32
    %c0_i32_0 = arith.constant 0 : i32
    %c0_i32_1 = arith.constant 0 : i32
    return %c0_i32, %c0_i32_0 : i32, i32
  }
  func.func @transform_8(%arg0: i32) -> (i32, i32) {
    %c0_i32 = arith.constant 0 : i32
    %c0_i32_0 = arith.constant 0 : i32
    %c0_i32_1 = arith.constant 0 : i32
    return %c0_i32, %c0_i32_0 : i32, i32
  }
  func.func @transform_9(%arg0: i32) -> (i32, i32) {
    %c0_i32 = arith.constant 0 : i32
    %c0_i32_0 = arith.constant 0 : i32
    return %arg0, %c0_i32 : i32, i32
  }
  func.func @transform_10(%arg0: i32) -> (i32, i32) {
    %c0_i32 = arith.constant 0 : i32
    %c0_i32_0 = arith.constant 0 : i32
    return %arg0, %c0_i32 : i32, i32
  }
}

</mosaic_0001>

<llo_original>
// kernel: tpu_custom_call.1
$region0: #{tpu_custom_call.1}
  #allocation0 [shape = 'u32[]', space=smem, size = 0x4, offset = 0x4, fixed_abs, tag = 'smem constant byte address 0x4 - core index']
  #allocation1 [shape = 'u32[72,128]{1,0:T(1,128)}', space=vmem, size = 0x9000, scoped, tag = 'internal scratch']
  %s0 = inlined_call_operand.hbm [shape: f32[256,768], index: 0, kind: input, shape index: {}]
  %s1 = inlined_call_operand.hbm [shape: bf16[768,128], index: 1, kind: input, shape index: {}]
  %s2 = inlined_call_operand.vmem [shape: f32[1,128], index: 2, kind: input, shape index: {}]
  %s3 = inlined_call_operand.hbm [shape: bf16[128,128], index: 3, kind: input, shape index: {}]
  %s4 = inlined_call_operand.hbm [shape: f32[1,128], index: 4, kind: input, shape index: {}]
  %s5 = inlined_call_operand.hbm [shape: bf16[128,128], index: 5, kind: input, shape index: {}]
  %s6 = inlined_call_operand.hbm [shape: f32[1,128], index: 6, kind: input, shape index: {}]
  %s7 = inlined_call_operand.hbm [shape: bf16[128,768], index: 7, kind: input, shape index: {}]
  %s8 = inlined_call_operand.vmem [shape: f32[1,768], index: 8, kind: input, shape index: {}]
  %s9 = inlined_call_operand.hbm [shape: bf16[256,768], index: 9, kind: output, shape index: {0}]
  %s10 = inlined_call_operand.hbm [shape: bf16[256,128], index: 10, kind: output, shape index: {1}]
  %11 = xla_tuple %s9, %s10
  %s12 = sld [smem:[#allocation0]]
  $region105: #{tpu_custom_call.1} parent=0
    _
  %s14 = ssub.s32 1, %s12
  %s15 = scalar_select 0, %s14, %s12
  $region1: #{tpu_custom_call.1} parent=0
    #allocation2 [shape = 'u8[786432]{0}', space=vmem, size = 0xc0000, scoped, tag = 'input window, operand 0']
    #allocation3 [shape = 's32[2]{0}', space=sflag, size = 0x8, scoped, tag = 'scoped memory for tpu_custom_call.1']
    #allocation4 [shape = 's32[2]{0}', space=sflag, size = 0x8, scoped, tag = 'scoped memory for tpu_custom_call.1']
    #allocation5 [shape = 'u8[196608]{0}', space=vmem, size = 0x30000, scoped, tag = 'input window, operand 1, single buffered']
    #allocation6 [shape = 's32[1]{0}', space=sflag, size = 0x4, scoped, tag = 'scoped memory for tpu_custom_call.1']
    #allocation7 [shape = 'u8[32768]{0}', space=vmem, size = 0x8000, scoped, tag = 'input window, operand 3, single buffered']
    #allocation8 [shape = 'u8[512]{0}', space=vmem, size = 0x400, scoped, tag = 'input window, operand 4, single buffered']
    #allocation9 [shape = 's32[1]{0}', space=sflag, size = 0x4, scoped, tag = 'scoped memory for tpu_custom_call.1']
    #allocation10 [shape = 'u8[32768]{0}', space=vmem, size = 0x8000, scoped, tag = 'input window, operand 5, single buffered']
    #allocation11 [shape = 'u8[512]{0}', space=vmem, size = 0x400, scoped, tag = 'input window, operand 6, single buffered']
    #allocation12 [shape = 's32[1]{0}', space=sflag, size = 0x4, scoped, tag = 'scoped memory for tpu_custom_call.1']
    #allocation13 [shape = 'u8[196608]{0}', space=vmem, size = 0x30000, scoped, tag = 'input window, operand 7, single buffered']
    #allocation14 [shape = 'u8[393216]{0}', space=vmem, size = 0x60000, scoped, tag = 'output window, operand 0']
    #allocation15 [shape = 'u8[65536]{0}', space=vmem, size = 0x10000, scoped, tag = 'output window, operand 1']
    #allocation16 [shape = 's32[2]{0}', space=sflag, size = 0x8, scoped, tag = 'scoped memory for tpu_custom_call.1']
    %16 = vsyncpa [#allocation3], 0
    %s17 = scalar_lea.sflag [#allocation3], 1
    %18 = vsyncpa %s17, 0
    %19 = vsyncpa [#allocation6], 0
    %20 = vsyncpa [#allocation9], 0
    %21 = vsyncpa [#allocation12], 0
    %22 = vsyncpa [#allocation4], 0
    %s23 = scalar_lea.sflag [#allocation4], 1
    %24 = vsyncpa %s23, 0
    %25 = vsyncpa [#allocation16], 0
    %s26 = scalar_lea.sflag [#allocation16], 1
    %27 = vsyncpa %s26, 0
    loop: start=0, step=1, limit=4
    $region2: #{tpu_custom_call.1} parent=1 // loop_pre_header
      _
    $region3: #{tpu_custom_call.1} parent=1 // loop_header
      %s29 = sphi 0, %s33
      %p30 = scmp.ge.s32.totalorder %s29, 4
      %s39 = sphi 0, %s41
      %s42 = sphi 0, %s39
      %s43 = sphi 0, %s42
      %s59 = sphi 0, %s43
      %s63 = sphi 0, %s63
      %s65 = sphi 0, %s63
      %s66 = sphi 0, %s65
      %s80 = sphi 0, %s66
      %s84 = sphi 0, %s84
      %s86 = sphi 0, %s84
      %s87 = sphi 0, %s86
      %s101 = sphi 0, %s87
      %s105 = sphi 0, %s105
      %s107 = sphi 0, %s105
      %s108 = sphi 0, %s107
      %s122 = sphi 0, %s108
      %s126 = sphi 0, %s126
      %s128 = sphi 0, %s126
      %s129 = sphi 0, %s128
      %s143 = sphi 0, %s129
      %s147 = sphi 0, %s147
      %s149 = sphi 0, %s147
      %s150 = sphi 0, %s149
      %s164 = sphi 0, %s150
      %s168 = sphi 0, %s168
      %s170 = sphi 0, %s168
      %s171 = sphi 0, %s170
      %s185 = sphi 0, %s171
      %s189 = sphi 0, %s189
      %s191 = sphi 0, %s189
      %s192 = sphi 0, %s191
      %s206 = sphi 0, %s192
      %s210 = sphi 0, %s210
      %s212 = sphi 0, %s210
      %s213 = sphi 0, %s212
      %s227 = sphi 0, %s213
      %s233 = sphi 0, %s235
      %s236 = sphi 0, %s233
      %s237 = sphi 0, %s236
      %s253 = sphi 0, %s237
      %s259 = sphi 0, %s261
      %s262 = sphi 0, %s259
      %s263 = sphi 0, %s262
      %s279 = sphi 0, %s263
    $region4: #{tpu_custom_call.1} parent=1 // loop_header_branch
      %32 = sbr.rel (%p30) target = $region8
    $region5: #{tpu_custom_call.1} parent=1 // loop_body
      %s34 = ssub.s32 %s29, 1
      %s35 = ssub.s32 %s29, 2
      %s36 = sadd.s32 %s29, 1
      %s37 = ssub.s32 %s29, %s36
      %p38 = scmp.eq.s32.totalorder %s37, 0
      %s40 = sadd.s32 %s39, 1
      %s41 = scalar_select %p38, %s39, %s40
      %p44 = pneg %p38
      %p45 = scmp.eq.s32.totalorder %s29, 1
      %p46 = por %p44, %p45
      %p47 = scmp.ne.s32.totalorder %s39, %s42
      %p48 = scmp.eq.s32.totalorder %s29, 0
      %p49 = por %p47, %p48
      %p50 = scmp.ne.s32.totalorder %s39, %s42
      %p51 = scmp.eq.s32.totalorder %s34, 1
      %p52 = por %p50, %p51
      %p53 = scmp.ne.s32.totalorder %s42, %s43
      %p54 = scmp.eq.s32.totalorder %s34, 0
      %p55 = por %p53, %p54
      %p56 = scmp.ne.s32.totalorder %s42, %s43
      %p57 = scmp.eq.s32.totalorder %s35, 1
      %p58 = por %p56, %p57
      %p60 = scmp.ne.s32.totalorder %s43, %s59
      %p61 = scmp.eq.s32.totalorder %s35, 0
      %p62 = por %p60, %p61
      %s64 = sadd.s32 %s63, 1
      %p67 = scmp.eq.s32.totalorder %s29, 1
      %p68 = scmp.ne.s32.totalorder %s63, %s65
      %p69 = scmp.eq.s32.totalorder %s29, 0
      %p70 = por %p68, %p69
      %p71 = scmp.ne.s32.totalorder %s63, %s65
      %p72 = scmp.eq.s32.totalorder %s34, 1
      %p73 = por %p71, %p72
      %p74 = scmp.ne.s32.totalorder %s65, %s66
      %p75 = scmp.eq.s32.totalorder %s34, 0
      %p76 = por %p74, %p75
      %p77 = scmp.ne.s32.totalorder %s65, %s66
      %p78 = scmp.eq.s32.totalorder %s35, 1
      %p79 = por %p77, %p78
      %p81 = scmp.ne.s32.totalorder %s66, %s80
      %p82 = scmp.eq.s32.totalorder %s35, 0
      %p83 = por %p81, %p82
      %s85 = sadd.s32 %s84, 1
      %p88 = scmp.eq.s32.totalorder %s29, 1
      %p89 = scmp.ne.s32.totalorder %s84, %s86
      %p90 = scmp.eq.s32.totalorder %s29, 0
      %p91 = por %p89, %p90
      %p92 = scmp.ne.s32.totalorder %s84, %s86
      %p93 = scmp.eq.s32.totalorder %s34, 1
      %p94 = por %p92, %p93
      %p95 = scmp.ne.s32.totalorder %s86, %s87
      %p96 = scmp.eq.s32.totalorder %s34, 0
      %p97 = por %p95, %p96
      %p98 = scmp.ne.s32.totalorder %s86, %s87
      %p99 = scmp.eq.s32.totalorder %s35, 1
      %p100 = por %p98, %p99
      %p102 = scmp.ne.s32.totalorder %s87, %s101
      %p103 = scmp.eq.s32.totalorder %s35, 0
      %p104 = por %p102, %p103
      %s106 = sadd.s32 %s105, 1
      %p109 = scmp.eq.s32.totalorder %s29, 1
      %p110 = scmp.ne.s32.totalorder %s105, %s107
      %p111 = scmp.eq.s32.totalorder %s29, 0
      %p112 = por %p110, %p111
      %p113 = scmp.ne.s32.totalorder %s105, %s107
      %p114 = scmp.eq.s32.totalorder %s34, 1
      %p115 = por %p113, %p114
      %p116 = scmp.ne.s32.totalorder %s107, %s108
      %p117 = scmp.eq.s32.totalorder %s34, 0
      %p118 = por %p116, %p117
      %p119 = scmp.ne.s32.totalorder %s107, %s108
      %p120 = scmp.eq.s32.totalorder %s35, 1
      %p121 = por %p119, %p120
      %p123 = scmp.ne.s32.totalorder %s108, %s122
      %p124 = scmp.eq.s32.totalorder %s35, 0
      %p125 = por %p123, %p124
      %s127 = sadd.s32 %s126, 1
      %p130 = scmp.eq.s32.totalorder %s29, 1
      %p131 = scmp.ne.s32.totalorder %s126, %s128
      %p132 = scmp.eq.s32.totalorder %s29, 0
      %p133 = por %p131, %p132
      %p134 = scmp.ne.s32.totalorder %s126, %s128
      %p135 = scmp.eq.s32.totalorder %s34, 1
      %p136 = por %p134, %p135
      %p137 = scmp.ne.s32.totalorder %s128, %s129
      %p138 = scmp.eq.s32.totalorder %s34, 0
      %p139 = por %p137, %p138
      %p140 = scmp.ne.s32.totalorder %s128, %s129
      %p141 = scmp.eq.s32.totalorder %s35, 1
      %p142 = por %p140, %p141
      %p144 = scmp.ne.s32.totalorder %s129, %s143
      %p145 = scmp.eq.s32.totalorder %s35, 0
      %p146 = por %p144, %p145
      %s148 = sadd.s32 %s147, 1
      %p151 = scmp.eq.s32.totalorder %s29, 1
      %p152 = scmp.ne.s32.totalorder %s147, %s149
      %p153 = scmp.eq.s32.totalorder %s29, 0
      %p154 = por %p152, %p153
      %p155 = scmp.ne.s32.totalorder %s147, %s149
      %p156 = scmp.eq.s32.totalorder %s34, 1
      %p157 = por %p155, %p156
      %p158 = scmp.ne.s32.totalorder %s149, %s150
      %p159 = scmp.eq.s32.totalorder %s34, 0
      %p160 = por %p158, %p159
      %p161 = scmp.ne.s32.totalorder %s149, %s150
      %p162 = scmp.eq.s32.totalorder %s35, 1
      %p163 = por %p161, %p162
      %p165 = scmp.ne.s32.totalorder %s150, %s164
      %p166 = scmp.eq.s32.totalorder %s35, 0
      %p167 = por %p165, %p166
      %s169 = sadd.s32 %s168, 1
      %p172 = scmp.eq.s32.totalorder %s29, 1
      %p173 = scmp.ne.s32.totalorder %s168, %s170
      %p174 = scmp.eq.s32.totalorder %s29, 0
      %p175 = por %p173, %p174
      %p176 = scmp.ne.s32.totalorder %s168, %s170
      %p177 = scmp.eq.s32.totalorder %s34, 1
      %p178 = por %p176, %p177
      %p179 = scmp.ne.s32.totalorder %s170, %s171
      %p180 = scmp.eq.s32.totalorder %s34, 0
      %p181 = por %p179, %p180
      %p182 = scmp.ne.s32.totalorder %s170, %s171
      %p183 = scmp.eq.s32.totalorder %s35, 1
      %p184 = por %p182, %p183
      %p186 = scmp.ne.s32.totalorder %s171, %s185
      %p187 = scmp.eq.s32.totalorder %s35, 0
      %p188 = por %p186, %p187
      %s190 = sadd.s32 %s189, 1
      %p193 = scmp.eq.s32.totalorder %s29, 1
      %p194 = scmp.ne.s32.totalorder %s189, %s191
      %p195 = scmp.eq.s32.totalorder %s29, 0
      %p196 = por %p194, %p195
      %p197 = scmp.ne.s32.totalorder %s189, %s191
      %p198 = scmp.eq.s32.totalorder %s34, 1
      %p199 = por %p197, %p198
      %p200 = scmp.ne.s32.totalorder %s191, %s192
      %p201 = scmp.eq.s32.totalorder %s34, 0
      %p202 = por %p200, %p201
      %p203 = scmp.ne.s32.totalorder %s191, %s192
      %p204 = scmp.eq.s32.totalorder %s35, 1
      %p205 = por %p203, %p204
      %p207 = scmp.ne.s32.totalorder %s192, %s206
      %p208 = scmp.eq.s32.totalorder %s35, 0
      %p209 = por %p207, %p208
      %s211 = sadd.s32 %s210, 1
      %p214 = scmp.eq.s32.totalorder %s29, 1
      %p215 = scmp.ne.s32.totalorder %s210, %s212
      %p216 = scmp.eq.s32.totalorder %s29, 0
      %p217 = por %p215, %p216
      %p218 = scmp.ne.s32.totalorder %s210, %s212
      %p219 = scmp.eq.s32.totalorder %s34, 1
      %p220 = por %p218, %p219
      %p221 = scmp.ne.s32.totalorder %s212, %s213
      %p222 = scmp.eq.s32.totalorder %s34, 0
      %p223 = por %p221, %p222
      %p224 = scmp.ne.s32.totalorder %s212, %s213
      %p225 = scmp.eq.s32.totalorder %s35, 1
      %p226 = por %p224, %p225
      %p228 = scmp.ne.s32.totalorder %s213, %s227
      %p229 = scmp.eq.s32.totalorder %s35, 0
      %p230 = por %p228, %p229
      %s231 = ssub.s32 %s29, %s36
      %p232 = scmp.eq.s32.totalorder %s231, 0
      %s234 = sadd.s32 %s233, 1
      %s235 = scalar_select %p232, %s233, %s234
      %p238 = pneg %p232
      %p239 = scmp.eq.s32.totalorder %s29, 1
      %p240 = por %p238, %p239
      %p241 = scmp.ne.s32.totalorder %s233, %s236
      %p242 = scmp.eq.s32.totalorder %s29, 0
      %p243 = por %p241, %p242
      %p244 = scmp.ne.s32.totalorder %s233, %s236
      %p245 = scmp.eq.s32.totalorder %s34, 1
      %p246 = por %p244, %p245
      %p247 = scmp.ne.s32.totalorder %s236, %s237
      %p248 = scmp.eq.s32.totalorder %s34, 0
      %p249 = por %p247, %p248
      %p250 = scmp.ne.s32.totalorder %s236, %s237
      %p251 = scmp.eq.s32.totalorder %s35, 1
      %p252 = por %p250, %p251
      %p254 = scmp.ne.s32.totalorder %s237, %s253
      %p255 = scmp.eq.s32.totalorder %s35, 0
      %p256 = por %p254, %p255
      %s257 = ssub.s32 %s29, %s36
      %p258 = scmp.eq.s32.totalorder %s257, 0
      %s260 = sadd.s32 %s259, 1
      %s261 = scalar_select %p258, %s259, %s260
      %p264 = pneg %p258
      %p265 = scmp.eq.s32.totalorder %s29, 1
      %p266 = por %p264, %p265
      %p267 = scmp.ne.s32.totalorder %s259, %s262
      %p268 = scmp.eq.s32.totalorder %s29, 0
      %p269 = por %p267, %p268
      %p270 = scmp.ne.s32.totalorder %s259, %s262
      %p271 = scmp.eq.s32.totalorder %s34, 1
      %p272 = por %p270, %p271
      %p273 = scmp.ne.s32.totalorder %s262, %s263
      %p274 = scmp.eq.s32.totalorder %s34, 0
      %p275 = por %p273, %p274
      %p276 = scmp.ne.s32.totalorder %s262, %s263
      %p277 = scmp.eq.s32.totalorder %s35, 1
      %p278 = por %p276, %p277
      %p280 = scmp.ne.s32.totalorder %s263, %s279
      %p281 = scmp.eq.s32.totalorder %s35, 0
      %p282 = por %p280, %p281
      %p283 = scmp.le.s32.totalorder 1, %s29
      %p284 = scmp.lt.s32.totalorder %s29, 3
      %p285 = pnand %p283, %p284
      %p286 = pneg %p285
      // Predicated region
      $region9: #{tpu_custom_call.1} parent=5 // pred_check
        _
      $region10: #{tpu_custom_call.1} parent=5 // pred_check_branch
        %288 = sbr.rel (%p285) target = $region12
      $region11: #{tpu_custom_call.1} parent=5 // pred_region
        %s289 = ssub.s32 %s29, 1
        // Predicated region
        $region13: #{tpu_custom_call.1} parent=11 // pred_check
          %p290 = pneg %p76
        $region14: #{tpu_custom_call.1} parent=11 // pred_check_branch
          %292 = sbr.rel (%p290) target = $region16
        $region15: #{tpu_custom_call.1} parent=11 // pred_region
          %294 = vsyncadd [#allocation6], 0
          %s295 = sshll.u32 %s1, 4
          %s296 = int_to_ptr.hbm [resolvable:$true] %s295
          %s297 = sshll.u32 [#allocation5], 4
          %s298 = int_to_ptr.vmem [resolvable:$true] %s297
          %303 = dma.hbm_to_vmem [thread:$0]  %s296, 6144, %s298, [#allocation6], 64, 64, 4
        $region16: #{tpu_custom_call.1} parent=11 // pred_fallthru
          _
        // Predicated region
        $region17: #{tpu_custom_call.1} parent=11 // pred_check
          %p304 = pneg %p97
        $region18: #{tpu_custom_call.1} parent=11 // pred_check_branch
          %306 = sbr.rel (%p304) target = $region20
        $region19: #{tpu_custom_call.1} parent=11 // pred_region
          _
        $region20: #{tpu_custom_call.1} parent=11 // pred_fallthru
          _
        // Predicated region
        $region21: #{tpu_custom_call.1} parent=11 // pred_check
          %p307 = pneg %p118
        $region22: #{tpu_custom_call.1} parent=11 // pred_check_branch
          %309 = sbr.rel (%p307) target = $region24
        $region23: #{tpu_custom_call.1} parent=11 // pred_region
          %311 = vsyncadd [#allocation6], 0
          %s312 = sshll.u32 %s3, 4
          %s313 = int_to_ptr.hbm [resolvable:$true] %s312
          %s314 = sshll.u32 [#allocation7], 4
          %s315 = int_to_ptr.vmem [resolvable:$true] %s314
          %320 = dma.hbm_to_vmem [thread:$0]  %s313, 1024, %s315, [#allocation6], 64, 64, 4
        $region24: #{tpu_custom_call.1} parent=11 // pred_fallthru
          _
        // Predicated region
        $region25: #{tpu_custom_call.1} parent=11 // pred_check
          %p321 = pneg %p139
        $region26: #{tpu_custom_call.1} parent=11 // pred_check_branch
          %323 = sbr.rel (%p321) target = $region28
        $region27: #{tpu_custom_call.1} parent=11 // pred_region
          %325 = vsyncadd [#allocation9], 0
          %s327 = sshll.u32 %s4, 4
          %s328 = int_to_ptr.hbm [resolvable:$true] %s327
          %s329 = sshll.u32 [#allocation8], 4
          %s330 = int_to_ptr.vmem [resolvable:$true] %s329
          %332 = dma.hbm_to_vmem [thread:$0]  %s328, 16, %s330, [#allocation9]
        $region28: #{tpu_custom_call.1} parent=11 // pred_fallthru
          _
        // Predicated region
        $region29: #{tpu_custom_call.1} parent=11 // pred_check
          %p333 = pneg %p160
        $region30: #{tpu_custom_call.1} parent=11 // pred_check_branch
          %335 = sbr.rel (%p333) target = $region32
        $region31: #{tpu_custom_call.1} parent=11 // pred_region
          %337 = vsyncadd [#allocation9], 0
          %s338 = sshll.u32 %s5, 4
          %s339 = int_to_ptr.hbm [resolvable:$true] %s338
          %s340 = sshll.u32 [#allocation10], 4
          %s341 = int_to_ptr.vmem [resolvable:$true] %s340
          %346 = dma.hbm_to_vmem [thread:$0]  %s339, 1024, %s341, [#allocation9], 64, 64, 4
        $region32: #{tpu_custom_call.1} parent=11 // pred_fallthru
          _
        // Predicated region
        $region33: #{tpu_custom_call.1} parent=11 // pred_check
          %p347 = pneg %p181
        $region34: #{tpu_custom_call.1} parent=11 // pred_check_branch
          %349 = sbr.rel (%p347) target = $region36
        $region35: #{tpu_custom_call.1} parent=11 // pred_region
          %351 = vsyncadd [#allocation12], 0
          %s353 = sshll.u32 %s6, 4
          %s354 = int_to_ptr.hbm [resolvable:$true] %s353
          %s355 = sshll.u32 [#allocation11], 4
          %s356 = int_to_ptr.vmem [resolvable:$true] %s355
          %358 = dma.hbm_to_vmem [thread:$0]  %s354, 16, %s356, [#allocation12]
        $region36: #{tpu_custom_call.1} parent=11 // pred_fallthru
          _
        // Predicated region
        $region37: #{tpu_custom_call.1} parent=11 // pred_check
          %p359 = pneg %p202
        $region38: #{tpu_custom_call.1} parent=11 // pred_check_branch
          %361 = sbr.rel (%p359) target = $region40
        $region39: #{tpu_custom_call.1} parent=11 // pred_region
          %363 = vsyncadd [#allocation12], 0
          %s364 = sshll.u32 %s7, 4
          %s365 = int_to_ptr.hbm [resolvable:$true] %s364
          %s366 = sshll.u32 [#allocation13], 4
          %s367 = int_to_ptr.vmem [resolvable:$true] %s366
          %372 = dma.hbm_to_vmem [thread:$0]  %s365, 6144, %s367, [#allocation12], 384, 384, 24
        $region40: #{tpu_custom_call.1} parent=11 // pred_fallthru
          _
        // Predicated region
        $region41: #{tpu_custom_call.1} parent=11 // pred_check
          %p373 = pneg %p223
        $region42: #{tpu_custom_call.1} parent=11 // pred_check_branch
          %375 = sbr.rel (%p373) target = $region44
        $region43: #{tpu_custom_call.1} parent=11 // pred_region
          _
        $region44: #{tpu_custom_call.1} parent=11 // pred_fallthru
          _
      $region12: #{tpu_custom_call.1} parent=5 // pred_fallthru
        _
      %p376 = scmp.lt.s32.totalorder %s29, 2
      // Predicated region
      $region45: #{tpu_custom_call.1} parent=5 // pred_check
        %p377 = pneg %p376
      $region46: #{tpu_custom_call.1} parent=5 // pred_check_branch
        %379 = sbr.rel (%p377) target = $region48
      $region47: #{tpu_custom_call.1} parent=5 // pred_region
        // Predicated region
        $region49: #{tpu_custom_call.1} parent=47 // pred_check
          %p380 = pneg %p49
        $region50: #{tpu_custom_call.1} parent=47 // pred_check_branch
          %382 = sbr.rel (%p380) target = $region52
        $region51: #{tpu_custom_call.1} parent=47 // pred_region
          %s383 = sand.u32 %s39, 1
          %s384 = scalar_lea.sflag [#allocation3], %s383
          %s385 = sand.u32 %s39, 1
          %s386 = smul.addr %s385, 768
          %s387 = scalar_lea.vmem [#allocation2], %s386
          %s388 = smul.u32 16, %s29
          %390 = vsyncadd %s384, 0
          %s391 = smul.addr %s388, 6
          %s392 = smul.addr %s391, 8
          %s393 = scalar_lea.hbm %s0, %s392
          %s394 = sshll.u32 %s393, 4
          %s395 = int_to_ptr.hbm [resolvable:$true] %s394
          %s396 = sshll.u32 %s387, 4
          %s397 = int_to_ptr.vmem [resolvable:$true] %s396
          %402 = dma.hbm_to_vmem [thread:$0]  %s395, 12288, %s397, %s384, 768, 768, 48
        $region52: #{tpu_custom_call.1} parent=47 // pred_fallthru
          _
      $region48: #{tpu_custom_call.1} parent=5 // pred_fallthru
        _
      %p403 = scmp.le.s32.totalorder 1, %s29
      %p404 = scmp.lt.s32.totalorder %s29, 3
      %p405 = pnand %p403, %p404
      %p406 = pneg %p405
      // Predicated region
      $region53: #{tpu_custom_call.1} parent=5 // pred_check
        _
      $region54: #{tpu_custom_call.1} parent=5 // pred_check_branch
        %408 = sbr.rel (%p405) target = $region56
      $region55: #{tpu_custom_call.1} parent=5 // pred_region
        %s409 = ssub.s32 %s29, 1
        %s410 = sand.u32 %s42, 1
        %s411 = scalar_lea.sflag [#allocation3], %s410
        %s412 = sand.u32 %s42, 1
        %s413 = smul.addr %s412, 768
        %s414 = scalar_lea.vmem [#allocation2], %s413
        // Predicated region
        $region57: #{tpu_custom_call.1} parent=55 // pred_check
          %p415 = pneg %p55
        $region58: #{tpu_custom_call.1} parent=55 // pred_check_branch
          %417 = sbr.rel (%p415) target = $region60
        $region59: #{tpu_custom_call.1} parent=55 // pred_region
          %419 = dma.done %s411, 12288
        $region60: #{tpu_custom_call.1} parent=55 // pred_fallthru
          _
        // Predicated region
        $region61: #{tpu_custom_call.1} parent=55 // pred_check
          %p420 = pneg %p76
        $region62: #{tpu_custom_call.1} parent=55 // pred_check_branch
          %422 = sbr.rel (%p420) target = $region64
        $region63: #{tpu_custom_call.1} parent=55 // pred_region
          %424 = dma.done [#allocation6], 6144
        $region64: #{tpu_custom_call.1} parent=55 // pred_fallthru
          _
        // Predicated region
        $region65: #{tpu_custom_call.1} parent=55 // pred_check
          %p425 = pneg %p118
        $region66: #{tpu_custom_call.1} parent=55 // pred_check_branch
          %427 = sbr.rel (%p425) target = $region68
        $region67: #{tpu_custom_call.1} parent=55 // pred_region
          %429 = dma.done [#allocation6], 1024
        $region68: #{tpu_custom_call.1} parent=55 // pred_fallthru
          _
        // Predicated region
        $region69: #{tpu_custom_call.1} parent=55 // pred_check
          %p430 = pneg %p139
        $region70: #{tpu_custom_call.1} parent=55 // pred_check_branch
          %432 = sbr.rel (%p430) target = $region72
        $region71: #{tpu_custom_call.1} parent=55 // pred_region
          %434 = dma.done [#allocation9], 16
        $region72: #{tpu_custom_call.1} parent=55 // pred_fallthru
          _
        // Predicated region
        $region73: #{tpu_custom_call.1} parent=55 // pred_check
          %p435 = pneg %p160
        $region74: #{tpu_custom_call.1} parent=55 // pred_check_branch
          %437 = sbr.rel (%p435) target = $region76
        $region75: #{tpu_custom_call.1} parent=55 // pred_region
          %439 = dma.done [#allocation9], 1024
        $region76: #{tpu_custom_call.1} parent=55 // pred_fallthru
          _
        // Predicated region
        $region77: #{tpu_custom_call.1} parent=55 // pred_check
          %p440 = pneg %p181
        $region78: #{tpu_custom_call.1} parent=55 // pred_check_branch
          %442 = sbr.rel (%p440) target = $region80
        $region79: #{tpu_custom_call.1} parent=55 // pred_region
          %444 = dma.done [#allocation12], 16
        $region80: #{tpu_custom_call.1} parent=55 // pred_fallthru
          _
        // Predicated region
        $region81: #{tpu_custom_call.1} parent=55 // pred_check
          %p445 = pneg %p202
        $region82: #{tpu_custom_call.1} parent=55 // pred_check_branch
          %447 = sbr.rel (%p445) target = $region84
        $region83: #{tpu_custom_call.1} parent=55 // pred_region
          %449 = dma.done [#allocation12], 6144
        $region84: #{tpu_custom_call.1} parent=55 // pred_fallthru
          _
        %s450 = sand.u32 %s42, 1
        %s451 = scalar_lea.sflag [#allocation3], %s450
        %s452 = sand.u32 %s42, 1
        %s453 = smul.addr %s452, 768
        %s454 = scalar_lea.vmem [#allocation2], %s453
        %p455 = pneg %p55
        %p456 = pneg %p52
        %p457 = pneg %p76
        %p458 = pneg %p73
        %p459 = pneg %p97
        %p460 = pneg %p94
        %p461 = pneg %p118
        %p462 = pneg %p115
        %p463 = pneg %p139
        %p464 = pneg %p136
        %p465 = pneg %p160
        %p466 = pneg %p157
        %p467 = pneg %p181
        %p468 = pneg %p178
        %p469 = pneg %p202
        %p470 = pneg %p199
        %p471 = pneg %p223
        %p472 = pneg %p220
        %p473 = pneg %p249
        %p474 = pneg %p246
        %s475 = sand.u32 %s236, 1
        %s476 = scalar_lea.sflag [#allocation4], %s475
        %s477 = sand.u32 %s236, 1
        %s478 = smul.addr %s477, 384
        %s479 = scalar_lea.vmem [#allocation14], %s478
        %p480 = pneg %p275
        %p481 = pneg %p272
        %s482 = sand.u32 %s262, 1
        %s483 = scalar_lea.sflag [#allocation16], %s482
        %s484 = sand.u32 %s262, 1
        %s485 = smul.addr %s484, 64
        %s486 = scalar_lea.vmem [#allocation15], %s485
        %s487 = smul.u32 16, %s34
        %s488 = smul.u32 16, %s34
        %s489 = smul.u32 16, %s34
        %v490 = vld [vmem:[%s414] sm:$0xff]
        %v491 = vld [vmem:[%s414 + $0x8] sm:$0xff]
        %v492 = vld [vmem:[%s414 + $0x10] sm:$0xff]
        %v493 = vld [vmem:[%s414 + $0x18] sm:$0xff]
        %v494 = vld [vmem:[%s414 + $0x20] sm:$0xff]
        %v495 = vld [vmem:[%s414 + $0x28] sm:$0xff]
        %v496 = vld [vmem:[%s414 + $0x30] sm:$0xff]
        %v497 = vld [vmem:[%s414 + $0x38] sm:$0xff]
        %v498 = vld [vmem:[%s414 + $0x40] sm:$0xff]
        %v499 = vld [vmem:[%s414 + $0x48] sm:$0xff]
        %v500 = vld [vmem:[%s414 + $0x50] sm:$0xff]
        %v501 = vld [vmem:[%s414 + $0x58] sm:$0xff]
        %v502 = vld [vmem:[%s414 + $0x60] sm:$0xff]
        %v503 = vld [vmem:[%s414 + $0x68] sm:$0xff]
        %v504 = vld [vmem:[%s414 + $0x70] sm:$0xff]
        %v505 = vld [vmem:[%s414 + $0x78] sm:$0xff]
        %v506 = vld [vmem:[%s414 + $0x80] sm:$0xff]
        %v507 = vld [vmem:[%s414 + $0x88] sm:$0xff]
        %v508 = vld [vmem:[%s414 + $0x90] sm:$0xff]
        %v509 = vld [vmem:[%s414 + $0x98] sm:$0xff]
        %v510 = vld [vmem:[%s414 + $0xa0] sm:$0xff]
        %v511 = vld [vmem:[%s414 + $0xa8] sm:$0xff]
        %v512 = vld [vmem:[%s414 + $0xb0] sm:$0xff]
        %v513 = vld [vmem:[%s414 + $0xb8] sm:$0xff]
        %v514 = vld [vmem:[%s414 + $0xc0] sm:$0xff]
        %v515 = vld [vmem:[%s414 + $0xc8] sm:$0xff]
        %v516 = vld [vmem:[%s414 + $0xd0] sm:$0xff]
        %v517 = vld [vmem:[%s414 + $0xd8] sm:$0xff]
        %v518 = vld [vmem:[%s414 + $0xe0] sm:$0xff]
        %v519 = vld [vmem:[%s414 + $0xe8] sm:$0xff]
        %v520 = vld [vmem:[%s414 + $0xf0] sm:$0xff]
        %v521 = vld [vmem:[%s414 + $0xf8] sm:$0xff]
        %v522 = vld [vmem:[%s414 + $0x100] sm:$0xff]
        %v523 = vld [vmem:[%s414 + $0x108] sm:$0xff]
        %v524 = vld [vmem:[%s414 + $0x110] sm:$0xff]
        %v525 = vld [vmem:[%s414 + $0x118] sm:$0xff]
        %v526 = vld [vmem:[%s414 + $0x120] sm:$0xff]
        %v527 = vld [vmem:[%s414 + $0x128] sm:$0xff]
        %v528 = vld [vmem:[%s414 + $0x130] sm:$0xff]
        %v529 = vld [vmem:[%s414 + $0x138] sm:$0xff]
        %v530 = vld [vmem:[%s414 + $0x140] sm:$0xff]
        %v531 = vld [vmem:[%s414 + $0x148] sm:$0xff]
        %v532 = vld [vmem:[%s414 + $0x150] sm:$0xff]
        %v533 = vld [vmem:[%s414 + $0x158] sm:$0xff]
        %v534 = vld [vmem:[%s414 + $0x160] sm:$0xff]
        %v535 = vld [vmem:[%s414 + $0x168] sm:$0xff]
        %v536 = vld [vmem:[%s414 + $0x170] sm:$0xff]
        %v537 = vld [vmem:[%s414 + $0x178] sm:$0xff]
        %v538 = vld [vmem:[%s414 + $0x180] sm:$0xff]
        %v539 = vld [vmem:[%s414 + $0x188] sm:$0xff]
        %v540 = vld [vmem:[%s414 + $0x190] sm:$0xff]
        %v541 = vld [vmem:[%s414 + $0x198] sm:$0xff]
        %v542 = vld [vmem:[%s414 + $0x1a0] sm:$0xff]
        %v543 = vld [vmem:[%s414 + $0x1a8] sm:$0xff]
        %v544 = vld [vmem:[%s414 + $0x1b0] sm:$0xff]
        %v545 = vld [vmem:[%s414 + $0x1b8] sm:$0xff]
        %v546 = vld [vmem:[%s414 + $0x1c0] sm:$0xff]
        %v547 = vld [vmem:[%s414 + $0x1c8] sm:$0xff]
        %v548 = vld [vmem:[%s414 + $0x1d0] sm:$0xff]
        %v549 = vld [vmem:[%s414 + $0x1d8] sm:$0xff]
        %v550 = vld [vmem:[%s414 + $0x1e0] sm:$0xff]
        %v551 = vld [vmem:[%s414 + $0x1e8] sm:$0xff]
        %v552 = vld [vmem:[%s414 + $0x1f0] sm:$0xff]
        %v553 = vld [vmem:[%s414 + $0x1f8] sm:$0xff]
        %v554 = vld [vmem:[%s414 + $0x200] sm:$0xff]
        %v555 = vld [vmem:[%s414 + $0x208] sm:$0xff]
        %v556 = vld [vmem:[%s414 + $0x210] sm:$0xff]
        %v557 = vld [vmem:[%s414 + $0x218] sm:$0xff]
        %v558 = vld [vmem:[%s414 + $0x220] sm:$0xff]
        %v559 = vld [vmem:[%s414 + $0x228] sm:$0xff]
        %v560 = vld [vmem:[%s414 + $0x230] sm:$0xff]
        %v561 = vld [vmem:[%s414 + $0x238] sm:$0xff]
        %v562 = vld [vmem:[%s414 + $0x240] sm:$0xff]
        %v563 = vld [vmem:[%s414 + $0x248] sm:$0xff]
        %v564 = vld [vmem:[%s414 + $0x250] sm:$0xff]
        %v565 = vld [vmem:[%s414 + $0x258] sm:$0xff]
        %v566 = vld [vmem:[%s414 + $0x260] sm:$0xff]
        %v567 = vld [vmem:[%s414 + $0x268] sm:$0xff]
        %v568 = vld [vmem:[%s414 + $0x270] sm:$0xff]
        %v569 = vld [vmem:[%s414 + $0x278] sm:$0xff]
        %v570 = vld [vmem:[%s414 + $0x280] sm:$0xff]
        %v571 = vld [vmem:[%s414 + $0x288] sm:$0xff]
        %v572 = vld [vmem:[%s414 + $0x290] sm:$0xff]
        %v573 = vld [vmem:[%s414 + $0x298] sm:$0xff]
        %v574 = vld [vmem:[%s414 + $0x2a0] sm:$0xff]
        %v575 = vld [vmem:[%s414 + $0x2a8] sm:$0xff]
        %v576 = vld [vmem:[%s414 + $0x2b0] sm:$0xff]
        %v577 = vld [vmem:[%s414 + $0x2b8] sm:$0xff]
        %v578 = vld [vmem:[%s414 + $0x2c0] sm:$0xff]
        %v579 = vld [vmem:[%s414 + $0x2c8] sm:$0xff]
        %v580 = vld [vmem:[%s414 + $0x2d0] sm:$0xff]
        %v581 = vld [vmem:[%s414 + $0x2d8] sm:$0xff]
        %v582 = vld [vmem:[%s414 + $0x2e0] sm:$0xff]
        %v583 = vld [vmem:[%s414 + $0x2e8] sm:$0xff]
        %v584 = vld [vmem:[%s414 + $0x2f0] sm:$0xff]
        %v585 = vld [vmem:[%s414 + $0x2f8] sm:$0xff]
        %v586 = vpack.c.bf16 %v496, %v490
        %v587 = vpack.c.bf16 %v497, %v491
        %v588 = vpack.c.bf16 %v498, %v492
        %v589 = vpack.c.bf16 %v499, %v493
        %v590 = vpack.c.bf16 %v500, %v494
        %v591 = vpack.c.bf16 %v501, %v495
        %v592 = vpack.c.bf16 %v508, %v502
        %v593 = vpack.c.bf16 %v509, %v503
        %v594 = vpack.c.bf16 %v510, %v504
        %v595 = vpack.c.bf16 %v511, %v505
        %v596 = vpack.c.bf16 %v512, %v506
        %v597 = vpack.c.bf16 %v513, %v507
        %v598 = vpack.c.bf16 %v520, %v514
        %v599 = vpack.c.bf16 %v521, %v515
        %v600 = vpack.c.bf16 %v522, %v516
        %v601 = vpack.c.bf16 %v523, %v517
        %v602 = vpack.c.bf16 %v524, %v518
        %v603 = vpack.c.bf16 %v525, %v519
        %v604 = vpack.c.bf16 %v532, %v526
        %v605 = vpack.c.bf16 %v533, %v527
        %v606 = vpack.c.bf16 %v534, %v528
        %v607 = vpack.c.bf16 %v535, %v529
        %v608 = vpack.c.bf16 %v536, %v530
        %v609 = vpack.c.bf16 %v537, %v531
        %v610 = vpack.c.bf16 %v544, %v538
        %v611 = vpack.c.bf16 %v545, %v539
        %v612 = vpack.c.bf16 %v546, %v540
        %v613 = vpack.c.bf16 %v547, %v541
        %v614 = vpack.c.bf16 %v548, %v542
        %v615 = vpack.c.bf16 %v549, %v543
        %v616 = vpack.c.bf16 %v556, %v550
        %v617 = vpack.c.bf16 %v557, %v551
        %v618 = vpack.c.bf16 %v558, %v552
        %v619 = vpack.c.bf16 %v559, %v553
        %v620 = vpack.c.bf16 %v560, %v554
        %v621 = vpack.c.bf16 %v561, %v555
        %v622 = vpack.c.bf16 %v568, %v562
        %v623 = vpack.c.bf16 %v569, %v563
        %v624 = vpack.c.bf16 %v570, %v564
        %v625 = vpack.c.bf16 %v571, %v565
        %v626 = vpack.c.bf16 %v572, %v566
        %v627 = vpack.c.bf16 %v573, %v567
        %v628 = vpack.c.bf16 %v580, %v574
        %v629 = vpack.c.bf16 %v581, %v575
        %v630 = vpack.c.bf16 %v582, %v576
        %v631 = vpack.c.bf16 %v583, %v577
        %v632 = vpack.c.bf16 %v584, %v578
        %v633 = vpack.c.bf16 %v585, %v579
        %v634 = vld [vmem:[#allocation5] sm:$0xf]
        %v635 = vld [vmem:[#allocation5 + $0x4] sm:$0xf]
        %v636 = vld [vmem:[#allocation5 + $0x8] sm:$0xf]
        %v637 = vld [vmem:[#allocation5 + $0xc] sm:$0xf]
        %v638 = vld [vmem:[#allocation5 + $0x10] sm:$0xf]
        %v639 = vld [vmem:[#allocation5 + $0x14] sm:$0xf]
        %v640 = vld [vmem:[#allocation5 + $0x18] sm:$0xf]
        %v641 = vld [vmem:[#allocation5 + $0x1c] sm:$0xf]
        %v642 = vld [vmem:[#allocation5 + $0x20] sm:$0xf]
        %v643 = vld [vmem:[#allocation5 + $0x24] sm:$0xf]
        %v644 = vld [vmem:[#allocation5 + $0x28] sm:$0xf]
        %v645 = vld [vmem:[#allocation5 + $0x2c] sm:$0xf]
        %v646 = vld [vmem:[#allocation5 + $0x30] sm:$0xf]
        %v647 = vld [vmem:[#allocation5 + $0x34] sm:$0xf]
        %v648 = vld [vmem:[#allocation5 + $0x38] sm:$0xf]
        %v649 = vld [vmem:[#allocation5 + $0x3c] sm:$0xf]
        %v650 = vld [vmem:[#allocation5 + $0x40] sm:$0xf]
        %v651 = vld [vmem:[#allocation5 + $0x44] sm:$0xf]
        %v652 = vld [vmem:[#allocation5 + $0x48] sm:$0xf]
        %v653 = vld [vmem:[#allocation5 + $0x4c] sm:$0xf]
        %v654 = vld [vmem:[#allocation5 + $0x50] sm:$0xf]
        %v655 = vld [vmem:[#allocation5 + $0x54] sm:$0xf]
        %v656 = vld [vmem:[#allocation5 + $0x58] sm:$0xf]
        %v657 = vld [vmem:[#allocation5 + $0x5c] sm:$0xf]
        %v658 = vld [vmem:[#allocation5 + $0x60] sm:$0xf]
        %v659 = vld [vmem:[#allocation5 + $0x64] sm:$0xf]
        %v660 = vld [vmem:[#allocation5 + $0x68] sm:$0xf]
        %v661 = vld [vmem:[#allocation5 + $0x6c] sm:$0xf]
        %v662 = vld [vmem:[#allocation5 + $0x70] sm:$0xf]
        %v663 = vld [vmem:[#allocation5 + $0x74] sm:$0xf]
        %v664 = vld [vmem:[#allocation5 + $0x78] sm:$0xf]
        %v665 = vld [vmem:[#allocation5 + $0x7c] sm:$0xf]
        %v666 = vld [vmem:[#allocation5 + $0x80] sm:$0xf]
        %v667 = vld [vmem:[#allocation5 + $0x84] sm:$0xf]
        %v668 = vld [vmem:[#allocation5 + $0x88] sm:$0xf]
        %v669 = vld [vmem:[#allocation5 + $0x8c] sm:$0xf]
        %v670 = vld [vmem:[#allocation5 + $0x90] sm:$0xf]
        %v671 = vld [vmem:[#allocation5 + $0x94] sm:$0xf]
        %v672 = vld [vmem:[#allocation5 + $0x98] sm:$0xf]
        %v673 = vld [vmem:[#allocation5 + $0x9c] sm:$0xf]
        %v674 = vld [vmem:[#allocation5 + $0xa0] sm:$0xf]
        %v675 = vld [vmem:[#allocation5 + $0xa4] sm:$0xf]
        %v676 = vld [vmem:[#allocation5 + $0xa8] sm:$0xf]
        %v677 = vld [vmem:[#allocation5 + $0xac] sm:$0xf]
        %v678 = vld [vmem:[#allocation5 + $0xb0] sm:$0xf]
        %v679 = vld [vmem:[#allocation5 + $0xb4] sm:$0xf]
        %v680 = vld [vmem:[#allocation5 + $0xb8] sm:$0xf]
        %v681 = vld [vmem:[#allocation5 + $0xbc] sm:$0xf]
        %v682 = vld [vmem:[#allocation5 + $0xc0] sm:$0xf]
        %v683 = vld [vmem:[#allocation5 + $0xc4] sm:$0xf]
        %v684 = vld [vmem:[#allocation5 + $0xc8] sm:$0xf]
        %v685 = vld [vmem:[#allocation5 + $0xcc] sm:$0xf]
        %v686 = vld [vmem:[#allocation5 + $0xd0] sm:$0xf]
        %v687 = vld [vmem:[#allocation5 + $0xd4] sm:$0xf]
        %v688 = vld [vmem:[#allocation5 + $0xd8] sm:$0xf]
        %v689 = vld [vmem:[#allocation5 + $0xdc] sm:$0xf]
        %v690 = vld [vmem:[#allocation5 + $0xe0] sm:$0xf]
        %v691 = vld [vmem:[#allocation5 + $0xe4] sm:$0xf]
        %v692 = vld [vmem:[#allocation5 + $0xe8] sm:$0xf]
        %v693 = vld [vmem:[#allocation5 + $0xec] sm:$0xf]
        %v694 = vld [vmem:[#allocation5 + $0xf0] sm:$0xf]
        %v695 = vld [vmem:[#allocation5 + $0xf4] sm:$0xf]
        %v696 = vld [vmem:[#allocation5 + $0xf8] sm:$0xf]
        %v697 = vld [vmem:[#allocation5 + $0xfc] sm:$0xf]
        %v698 = vld [vmem:[#allocation5 + $0x100] sm:$0xf]
        %v699 = vld [vmem:[#allocation5 + $0x104] sm:$0xf]
        %v700 = vld [vmem:[#allocation5 + $0x108] sm:$0xf]
        %v701 = vld [vmem:[#allocation5 + $0x10c] sm:$0xf]
        %v702 = vld [vmem:[#allocation5 + $0x110] sm:$0xf]
        %v703 = vld [vmem:[#allocation5 + $0x114] sm:$0xf]
        %v704 = vld [vmem:[#allocation5 + $0x118] sm:$0xf]
        %v705 = vld [vmem:[#allocation5 + $0x11c] sm:$0xf]
        %v706 = vld [vmem:[#allocation5 + $0x120] sm:$0xf]
        %v707 = vld [vmem:[#allocation5 + $0x124] sm:$0xf]
        %v708 = vld [vmem:[#allocation5 + $0x128] sm:$0xf]
        %v709 = vld [vmem:[#allocation5 + $0x12c] sm:$0xf]
        %v710 = vld [vmem:[#allocation5 + $0x130] sm:$0xf]
        %v711 = vld [vmem:[#allocation5 + $0x134] sm:$0xf]
        %v712 = vld [vmem:[#allocation5 + $0x138] sm:$0xf]
        %v713 = vld [vmem:[#allocation5 + $0x13c] sm:$0xf]
        %v714 = vld [vmem:[#allocation5 + $0x140] sm:$0xf]
        %v715 = vld [vmem:[#allocation5 + $0x144] sm:$0xf]
        %v716 = vld [vmem:[#allocation5 + $0x148] sm:$0xf]
        %v717 = vld [vmem:[#allocation5 + $0x14c] sm:$0xf]
        %v718 = vld [vmem:[#allocation5 + $0x150] sm:$0xf]
        %v719 = vld [vmem:[#allocation5 + $0x154] sm:$0xf]
        %v720 = vld [vmem:[#allocation5 + $0x158] sm:$0xf]
        %v721 = vld [vmem:[#allocation5 + $0x15c] sm:$0xf]
        %v722 = vld [vmem:[#allocation5 + $0x160] sm:$0xf]
        %v723 = vld [vmem:[#allocation5 + $0x164] sm:$0xf]
        %v724 = vld [vmem:[#allocation5 + $0x168] sm:$0xf]
        %v725 = vld [vmem:[#allocation5 + $0x16c] sm:$0xf]
        %v726 = vld [vmem:[#allocation5 + $0x170] sm:$0xf]
        %v727 = vld [vmem:[#allocation5 + $0x174] sm:$0xf]
        %v728 = vld [vmem:[#allocation5 + $0x178] sm:$0xf]
        %v729 = vld [vmem:[#allocation5 + $0x17c] sm:$0xf]
        %v730 = vld [vmem:[%s2] sm:$0x1]
        %v732 = vperm.slane %v730, 0
        %v830 = vunpack.c.l.b16 %v634
        %v831 = vunpack.c.l.b16 %v635
        %v832 = vunpack.c.l.b16 %v636
        %v833 = vunpack.c.l.b16 %v637
        %v834 = vunpack.c.l.b16 %v638
        %v835 = vunpack.c.l.b16 %v639
        %v836 = vunpack.c.l.b16 %v640
        %v837 = vunpack.c.l.b16 %v641
        %v838 = vunpack.c.l.b16 %v642
        %v839 = vunpack.c.l.b16 %v643
        %v840 = vunpack.c.l.b16 %v644
        %v841 = vunpack.c.l.b16 %v645
        %v842 = vunpack.c.l.b16 %v646
        %v843 = vunpack.c.l.b16 %v647
        %v844 = vunpack.c.l.b16 %v648
        %v845 = vunpack.c.l.b16 %v649
        %v846 = vunpack.c.l.b16 %v650
        %v847 = vunpack.c.l.b16 %v651
        %v848 = vunpack.c.l.b16 %v652
        %v849 = vunpack.c.l.b16 %v653
        %v850 = vunpack.c.l.b16 %v654
        %v851 = vunpack.c.l.b16 %v655
        %v852 = vunpack.c.l.b16 %v656
        %v853 = vunpack.c.l.b16 %v657
        %v854 = vunpack.c.l.b16 %v658
        %v855 = vunpack.c.l.b16 %v659
        %v856 = vunpack.c.l.b16 %v660
        %v857 = vunpack.c.l.b16 %v661
        %v858 = vunpack.c.l.b16 %v662
        %v859 = vunpack.c.l.b16 %v663
        %v860 = vunpack.c.l.b16 %v664
        %v861 = vunpack.c.l.b16 %v665
        %v862 = vunpack.c.l.b16 %v666
        %v863 = vunpack.c.l.b16 %v667
        %v864 = vunpack.c.l.b16 %v668
        %v865 = vunpack.c.l.b16 %v669
        %v866 = vunpack.c.l.b16 %v670
        %v867 = vunpack.c.l.b16 %v671
        %v868 = vunpack.c.l.b16 %v672
        %v869 = vunpack.c.l.b16 %v673
        %v870 = vunpack.c.l.b16 %v674
        %v871 = vunpack.c.l.b16 %v675
        %v872 = vunpack.c.l.b16 %v676
        %v873 = vunpack.c.l.b16 %v677
        %v874 = vunpack.c.l.b16 %v678
        %v875 = vunpack.c.l.b16 %v679
        %v876 = vunpack.c.l.b16 %v680
        %v877 = vunpack.c.l.b16 %v681
        %v878 = vunpack.c.l.b16 %v682
        %v879 = vunpack.c.l.b16 %v683
        %v880 = vunpack.c.l.b16 %v684
        %v881 = vunpack.c.l.b16 %v685
        %v882 = vunpack.c.l.b16 %v686
        %v883 = vunpack.c.l.b16 %v687
        %v884 = vunpack.c.l.b16 %v688
        %v885 = vunpack.c.l.b16 %v689
        %v886 = vunpack.c.l.b16 %v690
        %v887 = vunpack.c.l.b16 %v691
        %v888 = vunpack.c.l.b16 %v692
        %v889 = vunpack.c.l.b16 %v693
        %v890 = vunpack.c.l.b16 %v694
        %v891 = vunpack.c.l.b16 %v695
        %v892 = vunpack.c.l.b16 %v696
        %v893 = vunpack.c.l.b16 %v697
        %v894 = vunpack.c.l.b16 %v698
        %v895 = vunpack.c.l.b16 %v699
        %v896 = vunpack.c.l.b16 %v700
        %v897 = vunpack.c.l.b16 %v701
        %v898 = vunpack.c.l.b16 %v702
        %v899 = vunpack.c.l.b16 %v703
        %v900 = vunpack.c.l.b16 %v704
        %v901 = vunpack.c.l.b16 %v705
        %v902 = vunpack.c.l.b16 %v706
        %v903 = vunpack.c.l.b16 %v707
        %v904 = vunpack.c.l.b16 %v708
        %v905 = vunpack.c.l.b16 %v709
        %v906 = vunpack.c.l.b16 %v710
        %v907 = vunpack.c.l.b16 %v711
        %v908 = vunpack.c.l.b16 %v712
        %v909 = vunpack.c.l.b16 %v713
        %v910 = vunpack.c.l.b16 %v714
        %v911 = vunpack.c.l.b16 %v715
        %v912 = vunpack.c.l.b16 %v716
        %v913 = vunpack.c.l.b16 %v717
        %v914 = vunpack.c.l.b16 %v718
        %v915 = vunpack.c.l.b16 %v719
        %v916 = vunpack.c.l.b16 %v720
        %v917 = vunpack.c.l.b16 %v721
        %v918 = vunpack.c.l.b16 %v722
        %v919 = vunpack.c.l.b16 %v723
        %v920 = vunpack.c.l.b16 %v724
        %v921 = vunpack.c.l.b16 %v725
        %v922 = vunpack.c.l.b16 %v726
        %v923 = vunpack.c.l.b16 %v727
        %v924 = vunpack.c.l.b16 %v728
        %v925 = vunpack.c.l.b16 %v729
        %v926 = vpack.c.b16 %v831, %v830
        %v927 = vpack.c.b16 %v833, %v832
        %v928 = vpack.c.b16 %v835, %v834
        %v929 = vpack.c.b16 %v837, %v836
        %v930 = vpack.c.b16 %v839, %v838
        %v931 = vpack.c.b16 %v841, %v840
        %v932 = vpack.c.b16 %v843, %v842
        %v933 = vpack.c.b16 %v845, %v844
        %v934 = vpack.c.b16 %v847, %v846
        %v935 = vpack.c.b16 %v849, %v848
        %v936 = vpack.c.b16 %v851, %v850
        %v937 = vpack.c.b16 %v853, %v852
        %v938 = vpack.c.b16 %v855, %v854
        %v939 = vpack.c.b16 %v857, %v856
        %v940 = vpack.c.b16 %v859, %v858
        %v941 = vpack.c.b16 %v861, %v860
        %v942 = vpack.c.b16 %v863, %v862
        %v943 = vpack.c.b16 %v865, %v864
        %v944 = vpack.c.b16 %v867, %v866
        %v945 = vpack.c.b16 %v869, %v868
        %v946 = vpack.c.b16 %v871, %v870
        %v947 = vpack.c.b16 %v873, %v872
        %v948 = vpack.c.b16 %v875, %v874
        %v949 = vpack.c.b16 %v877, %v876
        %v950 = vpack.c.b16 %v879, %v878
        %v951 = vpack.c.b16 %v881, %v880
        %v952 = vpack.c.b16 %v883, %v882
        %v953 = vpack.c.b16 %v885, %v884
        %v954 = vpack.c.b16 %v887, %v886
        %v955 = vpack.c.b16 %v889, %v888
        %v956 = vpack.c.b16 %v891, %v890
        %v957 = vpack.c.b16 %v893, %v892
        %v958 = vpack.c.b16 %v895, %v894
        %v959 = vpack.c.b16 %v897, %v896
        %v960 = vpack.c.b16 %v899, %v898
        %v961 = vpack.c.b16 %v901, %v900
        %v962 = vpack.c.b16 %v903, %v902
        %v963 = vpack.c.b16 %v905, %v904
        %v964 = vpack.c.b16 %v907, %v906
        %v965 = vpack.c.b16 %v909, %v908
        %v966 = vpack.c.b16 %v911, %v910
        %v967 = vpack.c.b16 %v913, %v912
        %v968 = vpack.c.b16 %v915, %v914
        %v969 = vpack.c.b16 %v917, %v916
        %v970 = vpack.c.b16 %v919, %v918
        %v971 = vpack.c.b16 %v921, %v920
        %v972 = vpack.c.b16 %v923, %v922
        %v973 = vpack.c.b16 %v925, %v924
        %1022 = vmatpush.bf16.msra.mxu0 %v933
        %1023 = vmatpush.bf16.msra.mxu0 %v932
        %1024 = vmatpush.bf16.msra.mxu0 %v931
        %1025 = vmatpush.bf16.msra.mxu0 %v930
        %1026 = vmatpush.bf16.msra.mxu0 %v929
        %1027 = vmatpush.bf16.msra.mxu0 %v928
        %1028 = vmatpush.bf16.msra.mxu0 %v927
        %1029 = vmatpush.bf16.msra.mxu0 %v926
        %1030 = vmatmul.bf16.gmra.mxu0 %v586
        %v1031 = vpop.f32.mrf.mxu0
        %v1032 = vadd.f32 %v732, %v1031
        %v1033 = vpop.f32.mrf.mxu0
        %v1034 = vadd.f32 %v732, %v1033
        %1035 = vmatmul.bf16.gmra.mxu0 %v592
        %v1036 = vpop.f32.mrf.mxu0
        %v1037 = vadd.f32 %v732, %v1036
        %v1038 = vpop.f32.mrf.mxu0
        %v1039 = vadd.f32 %v732, %v1038
        %1040 = vmatmul.bf16.gmra.mxu0 %v598
        %v1041 = vpop.f32.mrf.mxu0
        %v1042 = vadd.f32 %v732, %v1041
        %v1043 = vpop.f32.mrf.mxu0
        %v1044 = vadd.f32 %v732, %v1043
        %1045 = vmatmul.bf16.gmra.mxu0 %v604
        %v1046 = vpop.f32.mrf.mxu0
        %v1047 = vadd.f32 %v732, %v1046
        %v1048 = vpop.f32.mrf.mxu0
        %v1049 = vadd.f32 %v732, %v1048
        %1050 = vmatmul.bf16.gmra.mxu0 %v610
        %v1051 = vpop.f32.mrf.mxu0
        %v1052 = vadd.f32 %v732, %v1051
        %v1053 = vpop.f32.mrf.mxu0
        %v1054 = vadd.f32 %v732, %v1053
        %1055 = vmatmul.bf16.gmra.mxu0 %v616
        %v1056 = vpop.f32.mrf.mxu0
        %v1057 = vadd.f32 %v732, %v1056
        %v1058 = vpop.f32.mrf.mxu0
        %v1059 = vadd.f32 %v732, %v1058
        %1060 = vmatmul.bf16.gmra.mxu0 %v622
        %v1061 = vpop.f32.mrf.mxu0
        %v1062 = vadd.f32 %v732, %v1061
        %v1063 = vpop.f32.mrf.mxu0
        %v1064 = vadd.f32 %v732, %v1063
        %1065 = vmatmul.bf16.gmra.mxu0 %v628
        %v1066 = vpop.f32.mrf.mxu0
        %v1067 = vadd.f32 %v732, %v1066
        %v1068 = vpop.f32.mrf.mxu0
        %v1069 = vadd.f32 %v732, %v1068
        %1070 = vdwg.mxu0
        %1071 = vmatpush.bf16.msra.mxu0 %v941
        %1072 = vmatpush.bf16.msra.mxu0 %v940
        %1073 = vmatpush.bf16.msra.mxu0 %v939
        %1074 = vmatpush.bf16.msra.mxu0 %v938
        %1075 = vmatpush.bf16.msra.mxu0 %v937
        %1076 = vmatpush.bf16.msra.mxu0 %v936
        %1077 = vmatpush.bf16.msra.mxu0 %v935
        %1078 = vmatpush.bf16.msra.mxu0 %v934
        %1079 = vmatmul.bf16.gmra.mxu0 %v587
        %v1080 = vpop.f32.mrf.mxu0
        %v1081 = vadd.f32 %v1032, %v1080
        %v1082 = vpop.f32.mrf.mxu0
        %v1083 = vadd.f32 %v1034, %v1082
        %1084 = vmatmul.bf16.gmra.mxu0 %v593
        %v1085 = vpop.f32.mrf.mxu0
        %v1086 = vadd.f32 %v1037, %v1085
        %v1087 = vpop.f32.mrf.mxu0
        %v1088 = vadd.f32 %v1039, %v1087
        %1089 = vmatmul.bf16.gmra.mxu0 %v599
        %v1090 = vpop.f32.mrf.mxu0
        %v1091 = vadd.f32 %v1042, %v1090
        %v1092 = vpop.f32.mrf.mxu0
        %v1093 = vadd.f32 %v1044, %v1092
        %1094 = vmatmul.bf16.gmra.mxu0 %v605
        %v1095 = vpop.f32.mrf.mxu0
        %v1096 = vadd.f32 %v1047, %v1095
        %v1097 = vpop.f32.mrf.mxu0
        %v1098 = vadd.f32 %v1049, %v1097
        %1099 = vmatmul.bf16.gmra.mxu0 %v611
        %v1100 = vpop.f32.mrf.mxu0
        %v1101 = vadd.f32 %v1052, %v1100
        %v1102 = vpop.f32.mrf.mxu0
        %v1103 = vadd.f32 %v1054, %v1102
        %1104 = vmatmul.bf16.gmra.mxu0 %v617
        %v1105 = vpop.f32.mrf.mxu0
        %v1106 = vadd.f32 %v1057, %v1105
        %v1107 = vpop.f32.mrf.mxu0
        %v1108 = vadd.f32 %v1059, %v1107
        %1109 = vmatmul.bf16.gmra.mxu0 %v623
        %v1110 = vpop.f32.mrf.mxu0
        %v1111 = vadd.f32 %v1062, %v1110
        %v1112 = vpop.f32.mrf.mxu0
        %v1113 = vadd.f32 %v1064, %v1112
        %1114 = vmatmul.bf16.gmra.mxu0 %v629
        %v1115 = vpop.f32.mrf.mxu0
        %v1116 = vadd.f32 %v1067, %v1115
        %v1117 = vpop.f32.mrf.mxu0
        %v1118 = vadd.f32 %v1069, %v1117
        %1119 = vdwg.mxu0
        %1120 = vmatpush.bf16.msra.mxu0 %v949
        %1121 = vmatpush.bf16.msra.mxu0 %v948
        %1122 = vmatpush.bf16.msra.mxu0 %v947
        %1123 = vmatpush.bf16.msra.mxu0 %v946
        %1124 = vmatpush.bf16.msra.mxu0 %v945
        %1125 = vmatpush.bf16.msra.mxu0 %v944
        %1126 = vmatpush.bf16.msra.mxu0 %v943
        %1127 = vmatpush.bf16.msra.mxu0 %v942
        %1128 = vmatmul.bf16.gmra.mxu0 %v588
        %v1129 = vpop.f32.mrf.mxu0
        %v1130 = vadd.f32 %v1081, %v1129
        %v1131 = vpop.f32.mrf.mxu0
        %v1132 = vadd.f32 %v1083, %v1131
        %1133 = vmatmul.bf16.gmra.mxu0 %v594
        %v1134 = vpop.f32.mrf.mxu0
        %v1135 = vadd.f32 %v1086, %v1134
        %v1136 = vpop.f32.mrf.mxu0
        %v1137 = vadd.f32 %v1088, %v1136
        %1138 = vmatmul.bf16.gmra.mxu0 %v600
        %v1139 = vpop.f32.mrf.mxu0
        %v1140 = vadd.f32 %v1091, %v1139
        %v1141 = vpop.f32.mrf.mxu0
        %v1142 = vadd.f32 %v1093, %v1141
        %1143 = vmatmul.bf16.gmra.mxu0 %v606
        %v1144 = vpop.f32.mrf.mxu0
        %v1145 = vadd.f32 %v1096, %v1144
        %v1146 = vpop.f32.mrf.mxu0
        %v1147 = vadd.f32 %v1098, %v1146
        %1148 = vmatmul.bf16.gmra.mxu0 %v612
        %v1149 = vpop.f32.mrf.mxu0
        %v1150 = vadd.f32 %v1101, %v1149
        %v1151 = vpop.f32.mrf.mxu0
        %v1152 = vadd.f32 %v1103, %v1151
        %1153 = vmatmul.bf16.gmra.mxu0 %v618
        %v1154 = vpop.f32.mrf.mxu0
        %v1155 = vadd.f32 %v1106, %v1154
        %v1156 = vpop.f32.mrf.mxu0
        %v1157 = vadd.f32 %v1108, %v1156
        %1158 = vmatmul.bf16.gmra.mxu0 %v624
        %v1159 = vpop.f32.mrf.mxu0
        %v1160 = vadd.f32 %v1111, %v1159
        %v1161 = vpop.f32.mrf.mxu0
        %v1162 = vadd.f32 %v1113, %v1161
        %1163 = vmatmul.bf16.gmra.mxu0 %v630
        %v1164 = vpop.f32.mrf.mxu0
        %v1165 = vadd.f32 %v1116, %v1164
        %v1166 = vpop.f32.mrf.mxu0
        %v1167 = vadd.f32 %v1118, %v1166
        %1168 = vdwg.mxu0
        %1169 = vmatpush.bf16.msra.mxu0 %v957
        %1170 = vmatpush.bf16.msra.mxu0 %v956
        %1171 = vmatpush.bf16.msra.mxu0 %v955
        %1172 = vmatpush.bf16.msra.mxu0 %v954
        %1173 = vmatpush.bf16.msra.mxu0 %v953
        %1174 = vmatpush.bf16.msra.mxu0 %v952
        %1175 = vmatpush.bf16.msra.mxu0 %v951
        %1176 = vmatpush.bf16.msra.mxu0 %v950
        %1177 = vmatmul.bf16.gmra.mxu0 %v589
        %v1178 = vpop.f32.mrf.mxu0
        %v1179 = vadd.f32 %v1130, %v1178
        %v1180 = vpop.f32.mrf.mxu0
        %v1181 = vadd.f32 %v1132, %v1180
        %1182 = vmatmul.bf16.gmra.mxu0 %v595
        %v1183 = vpop.f32.mrf.mxu0
        %v1184 = vadd.f32 %v1135, %v1183
        %v1185 = vpop.f32.mrf.mxu0
        %v1186 = vadd.f32 %v1137, %v1185
        %1187 = vmatmul.bf16.gmra.mxu0 %v601
        %v1188 = vpop.f32.mrf.mxu0
        %v1189 = vadd.f32 %v1140, %v1188
        %v1190 = vpop.f32.mrf.mxu0
        %v1191 = vadd.f32 %v1142, %v1190
        %1192 = vmatmul.bf16.gmra.mxu0 %v607
        %v1193 = vpop.f32.mrf.mxu0
        %v1194 = vadd.f32 %v1145, %v1193
        %v1195 = vpop.f32.mrf.mxu0
        %v1196 = vadd.f32 %v1147, %v1195
        %1197 = vmatmul.bf16.gmra.mxu0 %v613
        %v1198 = vpop.f32.mrf.mxu0
        %v1199 = vadd.f32 %v1150, %v1198
        %v1200 = vpop.f32.mrf.mxu0
        %v1201 = vadd.f32 %v1152, %v1200
        %1202 = vmatmul.bf16.gmra.mxu0 %v619
        %v1203 = vpop.f32.mrf.mxu0
        %v1204 = vadd.f32 %v1155, %v1203
        %v1205 = vpop.f32.mrf.mxu0
        %v1206 = vadd.f32 %v1157, %v1205
        %1207 = vmatmul.bf16.gmra.mxu0 %v625
        %v1208 = vpop.f32.mrf.mxu0
        %v1209 = vadd.f32 %v1160, %v1208
        %v1210 = vpop.f32.mrf.mxu0
        %v1211 = vadd.f32 %v1162, %v1210
        %1212 = vmatmul.bf16.gmra.mxu0 %v631
        %v1213 = vpop.f32.mrf.mxu0
        %v1214 = vadd.f32 %v1165, %v1213
        %v1215 = vpop.f32.mrf.mxu0
        %v1216 = vadd.f32 %v1167, %v1215
        %1217 = vdwg.mxu0
        %1218 = vmatpush.bf16.msra.mxu0 %v965
        %1219 = vmatpush.bf16.msra.mxu0 %v964
        %1220 = vmatpush.bf16.msra.mxu0 %v963
        %1221 = vmatpush.bf16.msra.mxu0 %v962
        %1222 = vmatpush.bf16.msra.mxu0 %v961
        %1223 = vmatpush.bf16.msra.mxu0 %v960
        %1224 = vmatpush.bf16.msra.mxu0 %v959
        %1225 = vmatpush.bf16.msra.mxu0 %v958
        %1226 = vmatmul.bf16.gmra.mxu0 %v590
        %v1227 = vpop.f32.mrf.mxu0
        %v1228 = vadd.f32 %v1179, %v1227
        %v1229 = vpop.f32.mrf.mxu0
        %v1230 = vadd.f32 %v1181, %v1229
        %1231 = vmatmul.bf16.gmra.mxu0 %v596
        %v1232 = vpop.f32.mrf.mxu0
        %v1233 = vadd.f32 %v1184, %v1232
        %v1234 = vpop.f32.mrf.mxu0
        %v1235 = vadd.f32 %v1186, %v1234
        %1236 = vmatmul.bf16.gmra.mxu0 %v602
        %v1237 = vpop.f32.mrf.mxu0
        %v1238 = vadd.f32 %v1189, %v1237
        %v1239 = vpop.f32.mrf.mxu0
        %v1240 = vadd.f32 %v1191, %v1239
        %1241 = vmatmul.bf16.gmra.mxu0 %v608
        %v1242 = vpop.f32.mrf.mxu0
        %v1243 = vadd.f32 %v1194, %v1242
        %v1244 = vpop.f32.mrf.mxu0
        %v1245 = vadd.f32 %v1196, %v1244
        %1246 = vmatmul.bf16.gmra.mxu0 %v614
        %v1247 = vpop.f32.mrf.mxu0
        %v1248 = vadd.f32 %v1199, %v1247
        %v1249 = vpop.f32.mrf.mxu0
        %v1250 = vadd.f32 %v1201, %v1249
        %1251 = vmatmul.bf16.gmra.mxu0 %v620
        %v1252 = vpop.f32.mrf.mxu0
        %v1253 = vadd.f32 %v1204, %v1252
        %v1254 = vpop.f32.mrf.mxu0
        %v1255 = vadd.f32 %v1206, %v1254
        %1256 = vmatmul.bf16.gmra.mxu0 %v626
        %v1257 = vpop.f32.mrf.mxu0
        %v1258 = vadd.f32 %v1209, %v1257
        %v1259 = vpop.f32.mrf.mxu0
        %v1260 = vadd.f32 %v1211, %v1259
        %1261 = vmatmul.bf16.gmra.mxu0 %v632
        %v1262 = vpop.f32.mrf.mxu0
        %v1263 = vadd.f32 %v1214, %v1262
        %v1264 = vpop.f32.mrf.mxu0
        %v1265 = vadd.f32 %v1216, %v1264
        %1266 = vdwg.mxu0
        %1267 = vmatpush.bf16.msra.mxu0 %v973
        %1268 = vmatpush.bf16.msra.mxu0 %v972
        %1269 = vmatpush.bf16.msra.mxu0 %v971
        %1270 = vmatpush.bf16.msra.mxu0 %v970
        %1271 = vmatpush.bf16.msra.mxu0 %v969
        %1272 = vmatpush.bf16.msra.mxu0 %v968
        %1273 = vmatpush.bf16.msra.mxu0 %v967
        %1274 = vmatpush.bf16.msra.mxu0 %v966
        %1275 = vmatmul.bf16.gmra.mxu0 %v591
        %v1276 = vpop.f32.mrf.mxu0
        %v1277 = vadd.f32 %v1228, %v1276
        %v1278 = vpop.f32.mrf.mxu0
        %v1279 = vadd.f32 %v1230, %v1278
        %1280 = vmatmul.bf16.gmra.mxu0 %v597
        %v1281 = vpop.f32.mrf.mxu0
        %v1282 = vadd.f32 %v1233, %v1281
        %v1283 = vpop.f32.mrf.mxu0
        %v1284 = vadd.f32 %v1235, %v1283
        %1285 = vmatmul.bf16.gmra.mxu0 %v603
        %v1286 = vpop.f32.mrf.mxu0
        %v1287 = vadd.f32 %v1238, %v1286
        %v1288 = vpop.f32.mrf.mxu0
        %v1289 = vadd.f32 %v1240, %v1288
        %1290 = vmatmul.bf16.gmra.mxu0 %v609
        %v1291 = vpop.f32.mrf.mxu0
        %v1292 = vadd.f32 %v1243, %v1291
        %v1293 = vpop.f32.mrf.mxu0
        %v1294 = vadd.f32 %v1245, %v1293
        %1295 = vmatmul.bf16.gmra.mxu0 %v615
        %v1296 = vpop.f32.mrf.mxu0
        %v1297 = vadd.f32 %v1248, %v1296
        %v1298 = vpop.f32.mrf.mxu0
        %v1299 = vadd.f32 %v1250, %v1298
        %1300 = vmatmul.bf16.gmra.mxu0 %v621
        %v1301 = vpop.f32.mrf.mxu0
        %v1302 = vadd.f32 %v1253, %v1301
        %v1303 = vpop.f32.mrf.mxu0
        %v1304 = vadd.f32 %v1255, %v1303
        %1305 = vmatmul.bf16.gmra.mxu0 %v627
        %v1306 = vpop.f32.mrf.mxu0
        %v1307 = vadd.f32 %v1258, %v1306
        %v1308 = vpop.f32.mrf.mxu0
        %v1309 = vadd.f32 %v1260, %v1308
        %1310 = vmatmul.bf16.gmra.mxu0 %v633
        %v1311 = vpop.f32.mrf.mxu0
        %v1312 = vadd.f32 %v1263, %v1311
        %v1313 = vpop.f32.mrf.mxu0
        %v1314 = vadd.f32 %v1265, %v1313
        %1315 = vdwg.mxu0
        %v1316 = vmax.f32 %v1277, 0.0
        %v1317 = vmax.f32 %v1279, 0.0
        %v1318 = vmax.f32 %v1282, 0.0
        %v1319 = vmax.f32 %v1284, 0.0
        %v1320 = vmax.f32 %v1287, 0.0
        %v1321 = vmax.f32 %v1289, 0.0
        %v1322 = vmax.f32 %v1292, 0.0
        %v1323 = vmax.f32 %v1294, 0.0
        %v1324 = vmax.f32 %v1297, 0.0
        %v1325 = vmax.f32 %v1299, 0.0
        %v1326 = vmax.f32 %v1302, 0.0
        %v1327 = vmax.f32 %v1304, 0.0
        %v1328 = vmax.f32 %v1307, 0.0
        %v1329 = vmax.f32 %v1309, 0.0
        %v1330 = vmax.f32 %v1312, 0.0
        %v1331 = vmax.f32 %v1314, 0.0
        %v1332 = vpack.c.bf16 %v1317, %v1316
        %v1333 = vpack.c.bf16 %v1319, %v1318
        %v1334 = vpack.c.bf16 %v1321, %v1320
        %v1335 = vpack.c.bf16 %v1323, %v1322
        %v1336 = vpack.c.bf16 %v1325, %v1324
        %v1337 = vpack.c.bf16 %v1327, %v1326
        %v1338 = vpack.c.bf16 %v1329, %v1328
        %v1339 = vpack.c.bf16 %v1331, %v1330
        %v1340 = vld [vmem:[#allocation7] sm:$0xf]
        %v1341 = vld [vmem:[#allocation7 + $0x4] sm:$0xf]
        %v1342 = vld [vmem:[#allocation7 + $0x8] sm:$0xf]
        %v1343 = vld [vmem:[#allocation7 + $0xc] sm:$0xf]
        %v1344 = vld [vmem:[#allocation7 + $0x10] sm:$0xf]
        %v1345 = vld [vmem:[#allocation7 + $0x14] sm:$0xf]
        %v1346 = vld [vmem:[#allocation7 + $0x18] sm:$0xf]
        %v1347 = vld [vmem:[#allocation7 + $0x1c] sm:$0xf]
        %v1348 = vld [vmem:[#allocation7 + $0x20] sm:$0xf]
        %v1349 = vld [vmem:[#allocation7 + $0x24] sm:$0xf]
        %v1350 = vld [vmem:[#allocation7 + $0x28] sm:$0xf]
        %v1351 = vld [vmem:[#allocation7 + $0x2c] sm:$0xf]
        %v1352 = vld [vmem:[#allocation7 + $0x30] sm:$0xf]
        %v1353 = vld [vmem:[#allocation7 + $0x34] sm:$0xf]
        %v1354 = vld [vmem:[#allocation7 + $0x38] sm:$0xf]
        %v1355 = vld [vmem:[#allocation7 + $0x3c] sm:$0xf]
        %v1356 = vld [vmem:[#allocation8] sm:$0x1]
        %v1358 = vperm.slane %v1356, 0
        %v1376 = vunpack.c.l.b16 %v1340
        %v1377 = vunpack.c.l.b16 %v1341
        %v1378 = vunpack.c.l.b16 %v1342
        %v1379 = vunpack.c.l.b16 %v1343
        %v1380 = vunpack.c.l.b16 %v1344
        %v1381 = vunpack.c.l.b16 %v1345
        %v1382 = vunpack.c.l.b16 %v1346
        %v1383 = vunpack.c.l.b16 %v1347
        %v1384 = vunpack.c.l.b16 %v1348
        %v1385 = vunpack.c.l.b16 %v1349
        %v1386 = vunpack.c.l.b16 %v1350
        %v1387 = vunpack.c.l.b16 %v1351
        %v1388 = vunpack.c.l.b16 %v1352
        %v1389 = vunpack.c.l.b16 %v1353
        %v1390 = vunpack.c.l.b16 %v1354
        %v1391 = vunpack.c.l.b16 %v1355
        %v1392 = vpack.c.b16 %v1377, %v1376
        %v1393 = vpack.c.b16 %v1379, %v1378
        %v1394 = vpack.c.b16 %v1381, %v1380
        %v1395 = vpack.c.b16 %v1383, %v1382
        %v1396 = vpack.c.b16 %v1385, %v1384
        %v1397 = vpack.c.b16 %v1387, %v1386
        %v1398 = vpack.c.b16 %v1389, %v1388
        %v1399 = vpack.c.b16 %v1391, %v1390
        %1408 = vmatpush.bf16.msra.mxu0 %v1399
        %1409 = vmatpush.bf16.msra.mxu0 %v1398
        %1410 = vmatpush.bf16.msra.mxu0 %v1397
        %1411 = vmatpush.bf16.msra.mxu0 %v1396
        %1412 = vmatpush.bf16.msra.mxu0 %v1395
        %1413 = vmatpush.bf16.msra.mxu0 %v1394
        %1414 = vmatpush.bf16.msra.mxu0 %v1393
        %1415 = vmatpush.bf16.msra.mxu0 %v1392
        %1416 = vmatmul.bf16.gmra.mxu0 %v1332
        %v1417 = vpop.f32.mrf.mxu0
        %v1418 = vadd.f32 %v1358, %v1417
        %v1419 = vpop.f32.mrf.mxu0
        %v1420 = vadd.f32 %v1358, %v1419
        %1421 = vmatmul.bf16.gmra.mxu0 %v1333
        %v1422 = vpop.f32.mrf.mxu0
        %v1423 = vadd.f32 %v1358, %v1422
        %v1424 = vpop.f32.mrf.mxu0
        %v1425 = vadd.f32 %v1358, %v1424
        %1426 = vmatmul.bf16.gmra.mxu0 %v1334
        %v1427 = vpop.f32.mrf.mxu0
        %v1428 = vadd.f32 %v1358, %v1427
        %v1429 = vpop.f32.mrf.mxu0
        %v1430 = vadd.f32 %v1358, %v1429
        %1431 = vmatmul.bf16.gmra.mxu0 %v1335
        %v1432 = vpop.f32.mrf.mxu0
        %v1433 = vadd.f32 %v1358, %v1432
        %v1434 = vpop.f32.mrf.mxu0
        %v1435 = vadd.f32 %v1358, %v1434
        %1436 = vmatmul.bf16.gmra.mxu0 %v1336
        %v1437 = vpop.f32.mrf.mxu0
        %v1438 = vadd.f32 %v1358, %v1437
        %v1439 = vpop.f32.mrf.mxu0
        %v1440 = vadd.f32 %v1358, %v1439
        %1441 = vmatmul.bf16.gmra.mxu0 %v1337
        %v1442 = vpop.f32.mrf.mxu0
        %v1443 = vadd.f32 %v1358, %v1442
        %v1444 = vpop.f32.mrf.mxu0
        %v1445 = vadd.f32 %v1358, %v1444
        %1446 = vmatmul.bf16.gmra.mxu0 %v1338
        %v1447 = vpop.f32.mrf.mxu0
        %v1448 = vadd.f32 %v1358, %v1447
        %v1449 = vpop.f32.mrf.mxu0
        %v1450 = vadd.f32 %v1358, %v1449
        %1451 = vmatmul.bf16.gmra.mxu0 %v1339
        %v1452 = vpop.f32.mrf.mxu0
        %v1453 = vadd.f32 %v1358, %v1452
        %v1454 = vpop.f32.mrf.mxu0
        %v1455 = vadd.f32 %v1358, %v1454
        %1456 = vdwg.mxu0
        %v1457 = vmax.f32 %v1418, 0.0
        %v1458 = vmax.f32 %v1420, 0.0
        %v1459 = vmax.f32 %v1423, 0.0
        %v1460 = vmax.f32 %v1425, 0.0
        %v1461 = vmax.f32 %v1428, 0.0
        %v1462 = vmax.f32 %v1430, 0.0
        %v1463 = vmax.f32 %v1433, 0.0
        %v1464 = vmax.f32 %v1435, 0.0
        %v1465 = vmax.f32 %v1438, 0.0
        %v1466 = vmax.f32 %v1440, 0.0
        %v1467 = vmax.f32 %v1443, 0.0
        %v1468 = vmax.f32 %v1445, 0.0
        %v1469 = vmax.f32 %v1448, 0.0
        %v1470 = vmax.f32 %v1450, 0.0
        %v1471 = vmax.f32 %v1453, 0.0
        %v1472 = vmax.f32 %v1455, 0.0
        %v1473 = vpack.c.bf16 %v1457, %v1457
        %v1474 = vpack.c.bf16 %v1458, %v1458
        %v1475 = vpack.c.bf16 %v1459, %v1459
        %v1476 = vpack.c.bf16 %v1460, %v1460
        %v1477 = vpack.c.bf16 %v1461, %v1461
        %v1478 = vpack.c.bf16 %v1462, %v1462
        %v1479 = vpack.c.bf16 %v1463, %v1463
        %v1480 = vpack.c.bf16 %v1464, %v1464
        %v1481 = vpack.c.bf16 %v1465, %v1465
        %v1482 = vpack.c.bf16 %v1466, %v1466
        %v1483 = vpack.c.bf16 %v1467, %v1467
        %v1484 = vpack.c.bf16 %v1468, %v1468
        %v1485 = vpack.c.bf16 %v1469, %v1469
        %v1486 = vpack.c.bf16 %v1470, %v1470
        %v1487 = vpack.c.bf16 %v1471, %v1471
        %v1488 = vpack.c.bf16 %v1472, %v1472
        %v1489 = vld [vmem:[#allocation10] sm:$0xf]
        %v1490 = vld [vmem:[#allocation10 + $0x4] sm:$0xf]
        %v1491 = vld [vmem:[#allocation10 + $0x8] sm:$0xf]
        %v1492 = vld [vmem:[#allocation10 + $0xc] sm:$0xf]
        %v1493 = vld [vmem:[#allocation10 + $0x10] sm:$0xf]
        %v1494 = vld [vmem:[#allocation10 + $0x14] sm:$0xf]
        %v1495 = vld [vmem:[#allocation10 + $0x18] sm:$0xf]
        %v1496 = vld [vmem:[#allocation10 + $0x1c] sm:$0xf]
        %v1497 = vld [vmem:[#allocation10 + $0x20] sm:$0xf]
        %v1498 = vld [vmem:[#allocation10 + $0x24] sm:$0xf]
        %v1499 = vld [vmem:[#allocation10 + $0x28] sm:$0xf]
        %v1500 = vld [vmem:[#allocation10 + $0x2c] sm:$0xf]
        %v1501 = vld [vmem:[#allocation10 + $0x30] sm:$0xf]
        %v1502 = vld [vmem:[#allocation10 + $0x34] sm:$0xf]
        %v1503 = vld [vmem:[#allocation10 + $0x38] sm:$0xf]
        %v1504 = vld [vmem:[#allocation10 + $0x3c] sm:$0xf]
        %v1505 = vld [vmem:[#allocation11] sm:$0x1]
        %v1507 = vperm.slane %v1505, 0
        %v1525 = vunpack.c.l.b16 %v1473
        %v1526 = vunpack.c.l.b16 %v1474
        %v1527 = vunpack.c.l.b16 %v1475
        %v1528 = vunpack.c.l.b16 %v1476
        %v1529 = vunpack.c.l.b16 %v1477
        %v1530 = vunpack.c.l.b16 %v1478
        %v1531 = vunpack.c.l.b16 %v1479
        %v1532 = vunpack.c.l.b16 %v1480
        %v1533 = vunpack.c.l.b16 %v1481
        %v1534 = vunpack.c.l.b16 %v1482
        %v1535 = vunpack.c.l.b16 %v1483
        %v1536 = vunpack.c.l.b16 %v1484
        %v1537 = vunpack.c.l.b16 %v1485
        %v1538 = vunpack.c.l.b16 %v1486
        %v1539 = vunpack.c.l.b16 %v1487
        %v1540 = vunpack.c.l.b16 %v1488
        %v1541 = vpack.c.b16 %v1526, %v1525
        %v1542 = vpack.c.b16 %v1528, %v1527
        %v1543 = vpack.c.b16 %v1530, %v1529
        %v1544 = vpack.c.b16 %v1532, %v1531
        %v1545 = vpack.c.b16 %v1534, %v1533
        %v1546 = vpack.c.b16 %v1536, %v1535
        %v1547 = vpack.c.b16 %v1538, %v1537
        %v1548 = vpack.c.b16 %v1540, %v1539
        %v1573 = vunpack.c.l.b16 %v1489
        %v1574 = vunpack.c.l.b16 %v1490
        %v1575 = vunpack.c.l.b16 %v1491
        %v1576 = vunpack.c.l.b16 %v1492
        %v1577 = vunpack.c.l.b16 %v1493
        %v1578 = vunpack.c.l.b16 %v1494
        %v1579 = vunpack.c.l.b16 %v1495
        %v1580 = vunpack.c.l.b16 %v1496
        %v1581 = vunpack.c.l.b16 %v1497
        %v1582 = vunpack.c.l.b16 %v1498
        %v1583 = vunpack.c.l.b16 %v1499
        %v1584 = vunpack.c.l.b16 %v1500
        %v1585 = vunpack.c.l.b16 %v1501
        %v1586 = vunpack.c.l.b16 %v1502
        %v1587 = vunpack.c.l.b16 %v1503
        %v1588 = vunpack.c.l.b16 %v1504
        %v1589 = vpack.c.b16 %v1574, %v1573
        %v1590 = vpack.c.b16 %v1576, %v1575
        %v1591 = vpack.c.b16 %v1578, %v1577
        %v1592 = vpack.c.b16 %v1580, %v1579
        %v1593 = vpack.c.b16 %v1582, %v1581
        %v1594 = vpack.c.b16 %v1584, %v1583
        %v1595 = vpack.c.b16 %v1586, %v1585
        %v1596 = vpack.c.b16 %v1588, %v1587
        %1605 = vmatpush.bf16.msra.mxu0 %v1596
        %1606 = vmatpush.bf16.msra.mxu0 %v1595
        %1607 = vmatpush.bf16.msra.mxu0 %v1594
        %1608 = vmatpush.bf16.msra.mxu0 %v1593
        %1609 = vmatpush.bf16.msra.mxu0 %v1592
        %1610 = vmatpush.bf16.msra.mxu0 %v1591
        %1611 = vmatpush.bf16.msra.mxu0 %v1590
        %1612 = vmatpush.bf16.msra.mxu0 %v1589
        %1613 = vmatmul.bf16.gmra.mxu0 %v1541
        %v1614 = vpop.f32.mrf.mxu0
        %v1615 = vadd.f32 %v1507, %v1614
        %v1616 = vpop.f32.mrf.mxu0
        %v1617 = vadd.f32 %v1507, %v1616
        %1618 = vmatmul.bf16.gmra.mxu0 %v1542
        %v1619 = vpop.f32.mrf.mxu0
        %v1620 = vadd.f32 %v1507, %v1619
        %v1621 = vpop.f32.mrf.mxu0
        %v1622 = vadd.f32 %v1507, %v1621
        %1623 = vmatmul.bf16.gmra.mxu0 %v1543
        %v1624 = vpop.f32.mrf.mxu0
        %v1625 = vadd.f32 %v1507, %v1624
        %v1626 = vpop.f32.mrf.mxu0
        %v1627 = vadd.f32 %v1507, %v1626
        %1628 = vmatmul.bf16.gmra.mxu0 %v1544
        %v1629 = vpop.f32.mrf.mxu0
        %v1630 = vadd.f32 %v1507, %v1629
        %v1631 = vpop.f32.mrf.mxu0
        %v1632 = vadd.f32 %v1507, %v1631
        %1633 = vmatmul.bf16.gmra.mxu0 %v1545
        %v1634 = vpop.f32.mrf.mxu0
        %v1635 = vadd.f32 %v1507, %v1634
        %v1636 = vpop.f32.mrf.mxu0
        %v1637 = vadd.f32 %v1507, %v1636
        %1638 = vmatmul.bf16.gmra.mxu0 %v1546
        %v1639 = vpop.f32.mrf.mxu0
        %v1640 = vadd.f32 %v1507, %v1639
        %v1641 = vpop.f32.mrf.mxu0
        %v1642 = vadd.f32 %v1507, %v1641
        %1643 = vmatmul.bf16.gmra.mxu0 %v1547
        %v1644 = vpop.f32.mrf.mxu0
        %v1645 = vadd.f32 %v1507, %v1644
        %v1646 = vpop.f32.mrf.mxu0
        %v1647 = vadd.f32 %v1507, %v1646
        %1648 = vmatmul.bf16.gmra.mxu0 %v1548
        %v1649 = vpop.f32.mrf.mxu0
        %v1650 = vadd.f32 %v1507, %v1649
        %v1651 = vpop.f32.mrf.mxu0
        %v1652 = vadd.f32 %v1507, %v1651
        %1653 = vdwg.mxu0
        %v1654 = vmax.f32 %v1615, 0.0
        %v1655 = vmax.f32 %v1617, 0.0
        %v1656 = vmax.f32 %v1620, 0.0
        %v1657 = vmax.f32 %v1622, 0.0
        %v1658 = vmax.f32 %v1625, 0.0
        %v1659 = vmax.f32 %v1627, 0.0
        %v1660 = vmax.f32 %v1630, 0.0
        %v1661 = vmax.f32 %v1632, 0.0
        %v1662 = vmax.f32 %v1635, 0.0
        %v1663 = vmax.f32 %v1637, 0.0
        %v1664 = vmax.f32 %v1640, 0.0
        %v1665 = vmax.f32 %v1642, 0.0
        %v1666 = vmax.f32 %v1645, 0.0
        %v1667 = vmax.f32 %v1647, 0.0
        %v1668 = vmax.f32 %v1650, 0.0
        %v1669 = vmax.f32 %v1652, 0.0
        %v1670 = vpack.c.bf16 %v1655, %v1654
        %v1671 = vpack.c.bf16 %v1657, %v1656
        %v1672 = vpack.c.bf16 %v1659, %v1658
        %v1673 = vpack.c.bf16 %v1661, %v1660
        %v1674 = vpack.c.bf16 %v1663, %v1662
        %v1675 = vpack.c.bf16 %v1665, %v1664
        %v1676 = vpack.c.bf16 %v1667, %v1666
        %v1677 = vpack.c.bf16 %v1669, %v1668
        %v1678 = vld [vmem:[#allocation13] sm:$0xff]
        %v1679 = vld [vmem:[#allocation13 + $0x8] sm:$0xff]
        %v1680 = vld [vmem:[#allocation13 + $0x10] sm:$0xff]
        %v1681 = vld [vmem:[#allocation13 + $0x18] sm:$0xff]
        %v1682 = vld [vmem:[#allocation13 + $0x20] sm:$0xff]
        %v1683 = vld [vmem:[#allocation13 + $0x28] sm:$0xff]
        %v1684 = vld [vmem:[#allocation13 + $0x30] sm:$0xff]
        %v1685 = vld [vmem:[#allocation13 + $0x38] sm:$0xff]
        %v1686 = vld [vmem:[#allocation13 + $0x40] sm:$0xff]
        %v1687 = vld [vmem:[#allocation13 + $0x48] sm:$0xff]
        %v1688 = vld [vmem:[#allocation13 + $0x50] sm:$0xff]
        %v1689 = vld [vmem:[#allocation13 + $0x58] sm:$0xff]
        %v1690 = vld [vmem:[#allocation13 + $0x60] sm:$0xff]
        %v1691 = vld [vmem:[#allocation13 + $0x68] sm:$0xff]
        %v1692 = vld [vmem:[#allocation13 + $0x70] sm:$0xff]
        %v1693 = vld [vmem:[#allocation13 + $0x78] sm:$0xff]
        %v1694 = vld [vmem:[#allocation13 + $0x80] sm:$0xff]
        %v1695 = vld [vmem:[#allocation13 + $0x88] sm:$0xff]
        %v1696 = vld [vmem:[#allocation13 + $0x90] sm:$0xff]
        %v1697 = vld [vmem:[#allocation13 + $0x98] sm:$0xff]
        %v1698 = vld [vmem:[#allocation13 + $0xa0] sm:$0xff]
        %v1699 = vld [vmem:[#allocation13 + $0xa8] sm:$0xff]
        %v1700 = vld [vmem:[#allocation13 + $0xb0] sm:$0xff]
        %v1701 = vld [vmem:[#allocation13 + $0xb8] sm:$0xff]
        %v1702 = vld [vmem:[#allocation13 + $0xc0] sm:$0xff]
        %v1703 = vld [vmem:[#allocation13 + $0xc8] sm:$0xff]
        %v1704 = vld [vmem:[#allocation13 + $0xd0] sm:$0xff]
        %v1705 = vld [vmem:[#allocation13 + $0xd8] sm:$0xff]
        %v1706 = vld [vmem:[#allocation13 + $0xe0] sm:$0xff]
        %v1707 = vld [vmem:[#allocation13 + $0xe8] sm:$0xff]
        %v1708 = vld [vmem:[#allocation13 + $0xf0] sm:$0xff]
        %v1709 = vld [vmem:[#allocation13 + $0xf8] sm:$0xff]
        %v1710 = vld [vmem:[#allocation13 + $0x100] sm:$0xff]
        %v1711 = vld [vmem:[#allocation13 + $0x108] sm:$0xff]
        %v1712 = vld [vmem:[#allocation13 + $0x110] sm:$0xff]
        %v1713 = vld [vmem:[#allocation13 + $0x118] sm:$0xff]
        %v1714 = vld [vmem:[#allocation13 + $0x120] sm:$0xff]
        %v1715 = vld [vmem:[#allocation13 + $0x128] sm:$0xff]
        %v1716 = vld [vmem:[#allocation13 + $0x130] sm:$0xff]
        %v1717 = vld [vmem:[#allocation13 + $0x138] sm:$0xff]
        %v1718 = vld [vmem:[#allocation13 + $0x140] sm:$0xff]
        %v1719 = vld [vmem:[#allocation13 + $0x148] sm:$0xff]
        %v1720 = vld [vmem:[#allocation13 + $0x150] sm:$0xff]
        %v1721 = vld [vmem:[#allocation13 + $0x158] sm:$0xff]
        %v1722 = vld [vmem:[#allocation13 + $0x160] sm:$0xff]
        %v1723 = vld [vmem:[#allocation13 + $0x168] sm:$0xff]
        %v1724 = vld [vmem:[#allocation13 + $0x170] sm:$0xff]
        %v1725 = vld [vmem:[#allocation13 + $0x178] sm:$0xff]
        %v1726 = vld [vmem:[%s8] sm:$0x3f]
        %v1728 = vperm.slane %v1726, 0
        %v1729 = vperm.slane %v1726, 1
        %v1730 = vperm.slane %v1726, 2
        %v1731 = vperm.slane %v1726, 3
        %v1732 = vperm.slane %v1726, 4
        %v1733 = vperm.slane %v1726, 5
        %v1788 = vunpack.c.l.b16 %v1678
        %v1789 = vunpack.c.h.b16 %v1678
        %v1790 = vunpack.c.l.b16 %v1679
        %v1791 = vunpack.c.h.b16 %v1679
        %v1792 = vunpack.c.l.b16 %v1680
        %v1793 = vunpack.c.h.b16 %v1680
        %v1794 = vunpack.c.l.b16 %v1681
        %v1795 = vunpack.c.h.b16 %v1681
        %v1796 = vunpack.c.l.b16 %v1682
        %v1797 = vunpack.c.h.b16 %v1682
        %v1798 = vunpack.c.l.b16 %v1683
        %v1799 = vunpack.c.h.b16 %v1683
        %v1800 = vunpack.c.l.b16 %v1684
        %v1801 = vunpack.c.h.b16 %v1684
        %v1802 = vunpack.c.l.b16 %v1685
        %v1803 = vunpack.c.h.b16 %v1685
        %v1804 = vunpack.c.l.b16 %v1686
        %v1805 = vunpack.c.h.b16 %v1686
        %v1806 = vunpack.c.l.b16 %v1687
        %v1807 = vunpack.c.h.b16 %v1687
        %v1808 = vunpack.c.l.b16 %v1688
        %v1809 = vunpack.c.h.b16 %v1688
        %v1810 = vunpack.c.l.b16 %v1689
        %v1811 = vunpack.c.h.b16 %v1689
        %v1812 = vunpack.c.l.b16 %v1690
        %v1813 = vunpack.c.h.b16 %v1690
        %v1814 = vunpack.c.l.b16 %v1691
        %v1815 = vunpack.c.h.b16 %v1691
        %v1816 = vunpack.c.l.b16 %v1692
        %v1817 = vunpack.c.h.b16 %v1692
        %v1818 = vunpack.c.l.b16 %v1693
        %v1819 = vunpack.c.h.b16 %v1693
        %v1820 = vunpack.c.l.b16 %v1694
        %v1821 = vunpack.c.h.b16 %v1694
        %v1822 = vunpack.c.l.b16 %v1695
        %v1823 = vunpack.c.h.b16 %v1695
        %v1824 = vunpack.c.l.b16 %v1696
        %v1825 = vunpack.c.h.b16 %v1696
        %v1826 = vunpack.c.l.b16 %v1697
        %v1827 = vunpack.c.h.b16 %v1697
        %v1828 = vunpack.c.l.b16 %v1698
        %v1829 = vunpack.c.h.b16 %v1698
        %v1830 = vunpack.c.l.b16 %v1699
        %v1831 = vunpack.c.h.b16 %v1699
        %v1832 = vunpack.c.l.b16 %v1700
        %v1833 = vunpack.c.h.b16 %v1700
        %v1834 = vunpack.c.l.b16 %v1701
        %v1835 = vunpack.c.h.b16 %v1701
        %v1836 = vunpack.c.l.b16 %v1702
        %v1837 = vunpack.c.h.b16 %v1702
        %v1838 = vunpack.c.l.b16 %v1703
        %v1839 = vunpack.c.h.b16 %v1703
        %v1840 = vunpack.c.l.b16 %v1704
        %v1841 = vunpack.c.h.b16 %v1704
        %v1842 = vunpack.c.l.b16 %v1705
        %v1843 = vunpack.c.h.b16 %v1705
        %v1844 = vunpack.c.l.b16 %v1706
        %v1845 = vunpack.c.h.b16 %v1706
        %v1846 = vunpack.c.l.b16 %v1707
        %v1847 = vunpack.c.h.b16 %v1707
        %v1848 = vunpack.c.l.b16 %v1708
        %v1849 = vunpack.c.h.b16 %v1708
        %v1850 = vunpack.c.l.b16 %v1709
        %v1851 = vunpack.c.h.b16 %v1709
        %v1852 = vunpack.c.l.b16 %v1710
        %v1853 = vunpack.c.h.b16 %v1710
        %v1854 = vunpack.c.l.b16 %v1711
        %v1855 = vunpack.c.h.b16 %v1711
        %v1856 = vunpack.c.l.b16 %v1712
        %v1857 = vunpack.c.h.b16 %v1712
        %v1858 = vunpack.c.l.b16 %v1713
        %v1859 = vunpack.c.h.b16 %v1713
        %v1860 = vunpack.c.l.b16 %v1714
        %v1861 = vunpack.c.h.b16 %v1714
        %v1862 = vunpack.c.l.b16 %v1715
        %v1863 = vunpack.c.h.b16 %v1715
        %v1864 = vunpack.c.l.b16 %v1716
        %v1865 = vunpack.c.h.b16 %v1716
        %v1866 = vunpack.c.l.b16 %v1717
        %v1867 = vunpack.c.h.b16 %v1717
        %v1868 = vunpack.c.l.b16 %v1718
        %v1869 = vunpack.c.h.b16 %v1718
        %v1870 = vunpack.c.l.b16 %v1719
        %v1871 = vunpack.c.h.b16 %v1719
        %v1872 = vunpack.c.l.b16 %v1720
        %v1873 = vunpack.c.h.b16 %v1720
        %v1874 = vunpack.c.l.b16 %v1721
        %v1875 = vunpack.c.h.b16 %v1721
        %v1876 = vunpack.c.l.b16 %v1722
        %v1877 = vunpack.c.h.b16 %v1722
        %v1878 = vunpack.c.l.b16 %v1723
        %v1879 = vunpack.c.h.b16 %v1723
        %v1880 = vunpack.c.l.b16 %v1724
        %v1881 = vunpack.c.h.b16 %v1724
        %v1882 = vunpack.c.l.b16 %v1725
        %v1883 = vunpack.c.h.b16 %v1725
        %v1884 = vpack.c.b16 %v1794, %v1788
        %v1885 = vpack.c.b16 %v1795, %v1789
        %v1886 = vpack.c.b16 %v1796, %v1790
        %v1887 = vpack.c.b16 %v1797, %v1791
        %v1888 = vpack.c.b16 %v1798, %v1792
        %v1889 = vpack.c.b16 %v1799, %v1793
        %v1890 = vpack.c.b16 %v1806, %v1800
        %v1891 = vpack.c.b16 %v1807, %v1801
        %v1892 = vpack.c.b16 %v1808, %v1802
        %v1893 = vpack.c.b16 %v1809, %v1803
        %v1894 = vpack.c.b16 %v1810, %v1804
        %v1895 = vpack.c.b16 %v1811, %v1805
        %v1896 = vpack.c.b16 %v1818, %v1812
        %v1897 = vpack.c.b16 %v1819, %v1813
        %v1898 = vpack.c.b16 %v1820, %v1814
        %v1899 = vpack.c.b16 %v1821, %v1815
        %v1900 = vpack.c.b16 %v1822, %v1816
        %v1901 = vpack.c.b16 %v1823, %v1817
        %v1902 = vpack.c.b16 %v1830, %v1824
        %v1903 = vpack.c.b16 %v1831, %v1825
        %v1904 = vpack.c.b16 %v1832, %v1826
        %v1905 = vpack.c.b16 %v1833, %v1827
        %v1906 = vpack.c.b16 %v1834, %v1828
        %v1907 = vpack.c.b16 %v1835, %v1829
        %v1908 = vpack.c.b16 %v1842, %v1836
        %v1909 = vpack.c.b16 %v1843, %v1837
        %v1910 = vpack.c.b16 %v1844, %v1838
        %v1911 = vpack.c.b16 %v1845, %v1839
        %v1912 = vpack.c.b16 %v1846, %v1840
        %v1913 = vpack.c.b16 %v1847, %v1841
        %v1914 = vpack.c.b16 %v1854, %v1848
        %v1915 = vpack.c.b16 %v1855, %v1849
        %v1916 = vpack.c.b16 %v1856, %v1850
        %v1917 = vpack.c.b16 %v1857, %v1851
        %v1918 = vpack.c.b16 %v1858, %v1852
        %v1919 = vpack.c.b16 %v1859, %v1853
        %v1920 = vpack.c.b16 %v1866, %v1860
        %v1921 = vpack.c.b16 %v1867, %v1861
        %v1922 = vpack.c.b16 %v1868, %v1862
        %v1923 = vpack.c.b16 %v1869, %v1863
        %v1924 = vpack.c.b16 %v1870, %v1864
        %v1925 = vpack.c.b16 %v1871, %v1865
        %v1926 = vpack.c.b16 %v1878, %v1872
        %v1927 = vpack.c.b16 %v1879, %v1873
        %v1928 = vpack.c.b16 %v1880, %v1874
        %v1929 = vpack.c.b16 %v1881, %v1875
        %v1930 = vpack.c.b16 %v1882, %v1876
        %v1931 = vpack.c.b16 %v1883, %v1877
        %1980 = vmatpush.bf16.msra.mxu0 %v1926
        %1981 = vmatpush.bf16.msra.mxu0 %v1920
        %1982 = vmatpush.bf16.msra.mxu0 %v1914
        %1983 = vmatpush.bf16.msra.mxu0 %v1908
        %1984 = vmatpush.bf16.msra.mxu0 %v1902
        %1985 = vmatpush.bf16.msra.mxu0 %v1896
        %1986 = vmatpush.bf16.msra.mxu0 %v1890
        %1987 = vmatpush.bf16.msra.mxu0 %v1884
        %1988 = vmatmul.bf16.gmra.mxu0 %v1670
        %v1989 = vpop.f32.mrf.mxu0
        %v1990 = vadd.f32 %v1728, %v1989
        %v1991 = vpop.f32.mrf.mxu0
        %v1992 = vadd.f32 %v1728, %v1991
        %1993 = vmatmul.bf16.gmra.mxu0 %v1671
        %v1994 = vpop.f32.mrf.mxu0
        %v1995 = vadd.f32 %v1728, %v1994
        %v1996 = vpop.f32.mrf.mxu0
        %v1997 = vadd.f32 %v1728, %v1996
        %1998 = vmatmul.bf16.gmra.mxu0 %v1672
        %v1999 = vpop.f32.mrf.mxu0
        %v2000 = vadd.f32 %v1728, %v1999
        %v2001 = vpop.f32.mrf.mxu0
        %v2002 = vadd.f32 %v1728, %v2001
        %2003 = vmatmul.bf16.gmra.mxu0 %v1673
        %v2004 = vpop.f32.mrf.mxu0
        %v2005 = vadd.f32 %v1728, %v2004
        %v2006 = vpop.f32.mrf.mxu0
        %v2007 = vadd.f32 %v1728, %v2006
        %2008 = vmatmul.bf16.gmra.mxu0 %v1674
        %v2009 = vpop.f32.mrf.mxu0
        %v2010 = vadd.f32 %v1728, %v2009
        %v2011 = vpop.f32.mrf.mxu0
        %v2012 = vadd.f32 %v1728, %v2011
        %2013 = vmatmul.bf16.gmra.mxu0 %v1675
        %v2014 = vpop.f32.mrf.mxu0
        %v2015 = vadd.f32 %v1728, %v2014
        %v2016 = vpop.f32.mrf.mxu0
        %v2017 = vadd.f32 %v1728, %v2016
        %2018 = vmatmul.bf16.gmra.mxu0 %v1676
        %v2019 = vpop.f32.mrf.mxu0
        %v2020 = vadd.f32 %v1728, %v2019
        %v2021 = vpop.f32.mrf.mxu0
        %v2022 = vadd.f32 %v1728, %v2021
        %2023 = vmatmul.bf16.gmra.mxu0 %v1677
        %v2024 = vpop.f32.mrf.mxu0
        %v2025 = vadd.f32 %v1728, %v2024
        %v2026 = vpop.f32.mrf.mxu0
        %v2027 = vadd.f32 %v1728, %v2026
        %2028 = vdwg.mxu0
        %2029 = vmatpush.bf16.msra.mxu0 %v1927
        %2030 = vmatpush.bf16.msra.mxu0 %v1921
        %2031 = vmatpush.bf16.msra.mxu0 %v1915
        %2032 = vmatpush.bf16.msra.mxu0 %v1909
        %2033 = vmatpush.bf16.msra.mxu0 %v1903
        %2034 = vmatpush.bf16.msra.mxu0 %v1897
        %2035 = vmatpush.bf16.msra.mxu0 %v1891
        %2036 = vmatpush.bf16.msra.mxu0 %v1885
        %2037 = vmatmul.bf16.gmra.mxu0 %v1670
        %v2038 = vpop.f32.mrf.mxu0
        %v2039 = vadd.f32 %v1729, %v2038
        %v2040 = vpop.f32.mrf.mxu0
        %v2041 = vadd.f32 %v1729, %v2040
        %2042 = vmatmul.bf16.gmra.mxu0 %v1671
        %v2043 = vpop.f32.mrf.mxu0
        %v2044 = vadd.f32 %v1729, %v2043
        %v2045 = vpop.f32.mrf.mxu0
        %v2046 = vadd.f32 %v1729, %v2045
        %2047 = vmatmul.bf16.gmra.mxu0 %v1672
        %v2048 = vpop.f32.mrf.mxu0
        %v2049 = vadd.f32 %v1729, %v2048
        %v2050 = vpop.f32.mrf.mxu0
        %v2051 = vadd.f32 %v1729, %v2050
        %2052 = vmatmul.bf16.gmra.mxu0 %v1673
        %v2053 = vpop.f32.mrf.mxu0
        %v2054 = vadd.f32 %v1729, %v2053
        %v2055 = vpop.f32.mrf.mxu0
        %v2056 = vadd.f32 %v1729, %v2055
        %2057 = vmatmul.bf16.gmra.mxu0 %v1674
        %v2058 = vpop.f32.mrf.mxu0
        %v2059 = vadd.f32 %v1729, %v2058
        %v2060 = vpop.f32.mrf.mxu0
        %v2061 = vadd.f32 %v1729, %v2060
        %2062 = vmatmul.bf16.gmra.mxu0 %v1675
        %v2063 = vpop.f32.mrf.mxu0
        %v2064 = vadd.f32 %v1729, %v2063
        %v2065 = vpop.f32.mrf.mxu0
        %v2066 = vadd.f32 %v1729, %v2065
        %2067 = vmatmul.bf16.gmra.mxu0 %v1676
        %v2068 = vpop.f32.mrf.mxu0
        %v2069 = vadd.f32 %v1729, %v2068
        %v2070 = vpop.f32.mrf.mxu0
        %v2071 = vadd.f32 %v1729, %v2070
        %2072 = vmatmul.bf16.gmra.mxu0 %v1677
        %v2073 = vpop.f32.mrf.mxu0
        %v2074 = vadd.f32 %v1729, %v2073
        %v2075 = vpop.f32.mrf.mxu0
        %v2076 = vadd.f32 %v1729, %v2075
        %2077 = vdwg.mxu0
        %2078 = vmatpush.bf16.msra.mxu0 %v1928
        %2079 = vmatpush.bf16.msra.mxu0 %v1922
        %2080 = vmatpush.bf16.msra.mxu0 %v1916
        %2081 = vmatpush.bf16.msra.mxu0 %v1910
        %2082 = vmatpush.bf16.msra.mxu0 %v1904
        %2083 = vmatpush.bf16.msra.mxu0 %v1898
        %2084 = vmatpush.bf16.msra.mxu0 %v1892
        %2085 = vmatpush.bf16.msra.mxu0 %v1886
        %2086 = vmatmul.bf16.gmra.mxu0 %v1670
        %v2087 = vpop.f32.mrf.mxu0
        %v2088 = vadd.f32 %v1730, %v2087
        %v2089 = vpop.f32.mrf.mxu0
        %v2090 = vadd.f32 %v1730, %v2089
        %2091 = vmatmul.bf16.gmra.mxu0 %v1671
        %v2092 = vpop.f32.mrf.mxu0
        %v2093 = vadd.f32 %v1730, %v2092
        %v2094 = vpop.f32.mrf.mxu0
        %v2095 = vadd.f32 %v1730, %v2094
        %2096 = vmatmul.bf16.gmra.mxu0 %v1672
        %v2097 = vpop.f32.mrf.mxu0
        %v2098 = vadd.f32 %v1730, %v2097
        %v2099 = vpop.f32.mrf.mxu0
        %v2100 = vadd.f32 %v1730, %v2099
        %2101 = vmatmul.bf16.gmra.mxu0 %v1673
        %v2102 = vpop.f32.mrf.mxu0
        %v2103 = vadd.f32 %v1730, %v2102
        %v2104 = vpop.f32.mrf.mxu0
        %v2105 = vadd.f32 %v1730, %v2104
        %2106 = vmatmul.bf16.gmra.mxu0 %v1674
        %v2107 = vpop.f32.mrf.mxu0
        %v2108 = vadd.f32 %v1730, %v2107
        %v2109 = vpop.f32.mrf.mxu0
        %v2110 = vadd.f32 %v1730, %v2109
        %2111 = vmatmul.bf16.gmra.mxu0 %v1675
        %v2112 = vpop.f32.mrf.mxu0
        %v2113 = vadd.f32 %v1730, %v2112
        %v2114 = vpop.f32.mrf.mxu0
        %v2115 = vadd.f32 %v1730, %v2114
        %2116 = vmatmul.bf16.gmra.mxu0 %v1676
        %v2117 = vpop.f32.mrf.mxu0
        %v2118 = vadd.f32 %v1730, %v2117
        %v2119 = vpop.f32.mrf.mxu0
        %v2120 = vadd.f32 %v1730, %v2119
        %2121 = vmatmul.bf16.gmra.mxu0 %v1677
        %v2122 = vpop.f32.mrf.mxu0
        %v2123 = vadd.f32 %v1730, %v2122
        %v2124 = vpop.f32.mrf.mxu0
        %v2125 = vadd.f32 %v1730, %v2124
        %2126 = vdwg.mxu0
        %2127 = vmatpush.bf16.msra.mxu0 %v1929
        %2128 = vmatpush.bf16.msra.mxu0 %v1923
        %2129 = vmatpush.bf16.msra.mxu0 %v1917
        %2130 = vmatpush.bf16.msra.mxu0 %v1911
        %2131 = vmatpush.bf16.msra.mxu0 %v1905
        %2132 = vmatpush.bf16.msra.mxu0 %v1899
        %2133 = vmatpush.bf16.msra.mxu0 %v1893
        %2134 = vmatpush.bf16.msra.mxu0 %v1887
        %2135 = vmatmul.bf16.gmra.mxu0 %v1670
        %v2136 = vpop.f32.mrf.mxu0
        %v2137 = vadd.f32 %v1731, %v2136
        %v2138 = vpop.f32.mrf.mxu0
        %v2139 = vadd.f32 %v1731, %v2138
        %2140 = vmatmul.bf16.gmra.mxu0 %v1671
        %v2141 = vpop.f32.mrf.mxu0
        %v2142 = vadd.f32 %v1731, %v2141
        %v2143 = vpop.f32.mrf.mxu0
        %v2144 = vadd.f32 %v1731, %v2143
        %2145 = vmatmul.bf16.gmra.mxu0 %v1672
        %v2146 = vpop.f32.mrf.mxu0
        %v2147 = vadd.f32 %v1731, %v2146
        %v2148 = vpop.f32.mrf.mxu0
        %v2149 = vadd.f32 %v1731, %v2148
        %2150 = vmatmul.bf16.gmra.mxu0 %v1673
        %v2151 = vpop.f32.mrf.mxu0
        %v2152 = vadd.f32 %v1731, %v2151
        %v2153 = vpop.f32.mrf.mxu0
        %v2154 = vadd.f32 %v1731, %v2153
        %2155 = vmatmul.bf16.gmra.mxu0 %v1674
        %v2156 = vpop.f32.mrf.mxu0
        %v2157 = vadd.f32 %v1731, %v2156
        %v2158 = vpop.f32.mrf.mxu0
        %v2159 = vadd.f32 %v1731, %v2158
        %2160 = vmatmul.bf16.gmra.mxu0 %v1675
        %v2161 = vpop.f32.mrf.mxu0
        %v2162 = vadd.f32 %v1731, %v2161
        %v2163 = vpop.f32.mrf.mxu0
        %v2164 = vadd.f32 %v1731, %v2163
        %2165 = vmatmul.bf16.gmra.mxu0 %v1676
        %v2166 = vpop.f32.mrf.mxu0
        %v2167 = vadd.f32 %v1731, %v2166
        %v2168 = vpop.f32.mrf.mxu0
        %v2169 = vadd.f32 %v1731, %v2168
        %2170 = vmatmul.bf16.gmra.mxu0 %v1677
        %v2171 = vpop.f32.mrf.mxu0
        %v2172 = vadd.f32 %v1731, %v2171
        %v2173 = vpop.f32.mrf.mxu0
        %v2174 = vadd.f32 %v1731, %v2173
        %2175 = vdwg.mxu0
        %2176 = vmatpush.bf16.msra.mxu0 %v1930
        %2177 = vmatpush.bf16.msra.mxu0 %v1924
        %2178 = vmatpush.bf16.msra.mxu0 %v1918
        %2179 = vmatpush.bf16.msra.mxu0 %v1912
        %2180 = vmatpush.bf16.msra.mxu0 %v1906
        %2181 = vmatpush.bf16.msra.mxu0 %v1900
        %2182 = vmatpush.bf16.msra.mxu0 %v1894
        %2183 = vmatpush.bf16.msra.mxu0 %v1888
        %2184 = vmatmul.bf16.gmra.mxu0 %v1670
        %v2185 = vpop.f32.mrf.mxu0
        %v2186 = vadd.f32 %v1732, %v2185
        %v2187 = vpop.f32.mrf.mxu0
        %v2188 = vadd.f32 %v1732, %v2187
        %2189 = vmatmul.bf16.gmra.mxu0 %v1671
        %v2190 = vpop.f32.mrf.mxu0
        %v2191 = vadd.f32 %v1732, %v2190
        %v2192 = vpop.f32.mrf.mxu0
        %v2193 = vadd.f32 %v1732, %v2192
        %2194 = vmatmul.bf16.gmra.mxu0 %v1672
        %v2195 = vpop.f32.mrf.mxu0
        %v2196 = vadd.f32 %v1732, %v2195
        %v2197 = vpop.f32.mrf.mxu0
        %v2198 = vadd.f32 %v1732, %v2197
        %2199 = vmatmul.bf16.gmra.mxu0 %v1673
        %v2200 = vpop.f32.mrf.mxu0
        %v2201 = vadd.f32 %v1732, %v2200
        %v2202 = vpop.f32.mrf.mxu0
        %v2203 = vadd.f32 %v1732, %v2202
        %2204 = vmatmul.bf16.gmra.mxu0 %v1674
        %v2205 = vpop.f32.mrf.mxu0
        %v2206 = vadd.f32 %v1732, %v2205
        %v2207 = vpop.f32.mrf.mxu0
        %v2208 = vadd.f32 %v1732, %v2207
        %2209 = vmatmul.bf16.gmra.mxu0 %v1675
        %v2210 = vpop.f32.mrf.mxu0
        %v2211 = vadd.f32 %v1732, %v2210
        %v2212 = vpop.f32.mrf.mxu0
        %v2213 = vadd.f32 %v1732, %v2212
        %2214 = vmatmul.bf16.gmra.mxu0 %v1676
        %v2215 = vpop.f32.mrf.mxu0
        %v2216 = vadd.f32 %v1732, %v2215
        %v2217 = vpop.f32.mrf.mxu0
        %v2218 = vadd.f32 %v1732, %v2217
        %2219 = vmatmul.bf16.gmra.mxu0 %v1677
        %v2220 = vpop.f32.mrf.mxu0
        %v2221 = vadd.f32 %v1732, %v2220
        %v2222 = vpop.f32.mrf.mxu0
        %v2223 = vadd.f32 %v1732, %v2222
        %2224 = vdwg.mxu0
        %2225 = vmatpush.bf16.msra.mxu0 %v1931
        %2226 = vmatpush.bf16.msra.mxu0 %v1925
        %2227 = vmatpush.bf16.msra.mxu0 %v1919
        %2228 = vmatpush.bf16.msra.mxu0 %v1913
        %2229 = vmatpush.bf16.msra.mxu0 %v1907
        %2230 = vmatpush.bf16.msra.mxu0 %v1901
        %2231 = vmatpush.bf16.msra.mxu0 %v1895
        %2232 = vmatpush.bf16.msra.mxu0 %v1889
        %2233 = vmatmul.bf16.gmra.mxu0 %v1670
        %v2234 = vpop.f32.mrf.mxu0
        %v2235 = vadd.f32 %v1733, %v2234
        %v2236 = vpop.f32.mrf.mxu0
        %v2237 = vadd.f32 %v1733, %v2236
        %2238 = vmatmul.bf16.gmra.mxu0 %v1671
        %v2239 = vpop.f32.mrf.mxu0
        %v2240 = vadd.f32 %v1733, %v2239
        %v2241 = vpop.f32.mrf.mxu0
        %v2242 = vadd.f32 %v1733, %v2241
        %2243 = vmatmul.bf16.gmra.mxu0 %v1672
        %v2244 = vpop.f32.mrf.mxu0
        %v2245 = vadd.f32 %v1733, %v2244
        %v2246 = vpop.f32.mrf.mxu0
        %v2247 = vadd.f32 %v1733, %v2246
        %2248 = vmatmul.bf16.gmra.mxu0 %v1673
        %v2249 = vpop.f32.mrf.mxu0
        %v2250 = vadd.f32 %v1733, %v2249
        %v2251 = vpop.f32.mrf.mxu0
        %v2252 = vadd.f32 %v1733, %v2251
        %2253 = vmatmul.bf16.gmra.mxu0 %v1674
        %v2254 = vpop.f32.mrf.mxu0
        %v2255 = vadd.f32 %v1733, %v2254
        %v2256 = vpop.f32.mrf.mxu0
        %v2257 = vadd.f32 %v1733, %v2256
        %2258 = vmatmul.bf16.gmra.mxu0 %v1675
        %v2259 = vpop.f32.mrf.mxu0
        %v2260 = vadd.f32 %v1733, %v2259
        %v2261 = vpop.f32.mrf.mxu0
        %v2262 = vadd.f32 %v1733, %v2261
        %2263 = vmatmul.bf16.gmra.mxu0 %v1676
        %v2264 = vpop.f32.mrf.mxu0
        %v2265 = vadd.f32 %v1733, %v2264
        %v2266 = vpop.f32.mrf.mxu0
        %v2267 = vadd.f32 %v1733, %v2266
        %2268 = vmatmul.bf16.gmra.mxu0 %v1677
        %v2269 = vpop.f32.mrf.mxu0
        %v2270 = vadd.f32 %v1733, %v2269
        %v2271 = vpop.f32.mrf.mxu0
        %v2272 = vadd.f32 %v1733, %v2271
        %2273 = vdwg.mxu0
        %v2274 = vpack.c.bf16 %v2039, %v1990
        %v2275 = vpack.c.bf16 %v2137, %v2088
        %v2276 = vpack.c.bf16 %v2235, %v2186
        %v2277 = vpack.c.bf16 %v2041, %v1992
        %v2278 = vpack.c.bf16 %v2139, %v2090
        %v2279 = vpack.c.bf16 %v2237, %v2188
        %v2280 = vpack.c.bf16 %v2044, %v1995
        %v2281 = vpack.c.bf16 %v2142, %v2093
        %v2282 = vpack.c.bf16 %v2240, %v2191
        %v2283 = vpack.c.bf16 %v2046, %v1997
        %v2284 = vpack.c.bf16 %v2144, %v2095
        %v2285 = vpack.c.bf16 %v2242, %v2193
        %v2286 = vpack.c.bf16 %v2049, %v2000
        %v2287 = vpack.c.bf16 %v2147, %v2098
        %v2288 = vpack.c.bf16 %v2245, %v2196
        %v2289 = vpack.c.bf16 %v2051, %v2002
        %v2290 = vpack.c.bf16 %v2149, %v2100
        %v2291 = vpack.c.bf16 %v2247, %v2198
        %v2292 = vpack.c.bf16 %v2054, %v2005
        %v2293 = vpack.c.bf16 %v2152, %v2103
        %v2294 = vpack.c.bf16 %v2250, %v2201
        %v2295 = vpack.c.bf16 %v2056, %v2007
        %v2296 = vpack.c.bf16 %v2154, %v2105
        %v2297 = vpack.c.bf16 %v2252, %v2203
        %v2298 = vpack.c.bf16 %v2059, %v2010
        %v2299 = vpack.c.bf16 %v2157, %v2108
        %v2300 = vpack.c.bf16 %v2255, %v2206
        %v2301 = vpack.c.bf16 %v2061, %v2012
        %v2302 = vpack.c.bf16 %v2159, %v2110
        %v2303 = vpack.c.bf16 %v2257, %v2208
        %v2304 = vpack.c.bf16 %v2064, %v2015
        %v2305 = vpack.c.bf16 %v2162, %v2113
        %v2306 = vpack.c.bf16 %v2260, %v2211
        %v2307 = vpack.c.bf16 %v2066, %v2017
        %v2308 = vpack.c.bf16 %v2164, %v2115
        %v2309 = vpack.c.bf16 %v2262, %v2213
        %v2310 = vpack.c.bf16 %v2069, %v2020
        %v2311 = vpack.c.bf16 %v2167, %v2118
        %v2312 = vpack.c.bf16 %v2265, %v2216
        %v2313 = vpack.c.bf16 %v2071, %v2022
        %v2314 = vpack.c.bf16 %v2169, %v2120
        %v2315 = vpack.c.bf16 %v2267, %v2218
        %v2316 = vpack.c.bf16 %v2074, %v2025
        %v2317 = vpack.c.bf16 %v2172, %v2123
        %v2318 = vpack.c.bf16 %v2270, %v2221
        %v2319 = vpack.c.bf16 %v2076, %v2027
        %v2320 = vpack.c.bf16 %v2174, %v2125
        %v2321 = vpack.c.bf16 %v2272, %v2223
        %2322 = vst [vmem:[%s479] sm:$0xff] %v2274
        %2323 = vst [vmem:[%s479 + $0x8] sm:$0xff] %v2275
        %2324 = vst [vmem:[%s479 + $0x10] sm:$0xff] %v2276
        %2325 = vst [vmem:[%s479 + $0x18] sm:$0xff] %v2277
        %2326 = vst [vmem:[%s479 + $0x20] sm:$0xff] %v2278
        %2327 = vst [vmem:[%s479 + $0x28] sm:$0xff] %v2279
        %2328 = vst [vmem:[%s479 + $0x30] sm:$0xff] %v2280
        %2329 = vst [vmem:[%s479 + $0x38] sm:$0xff] %v2281
        %2330 = vst [vmem:[%s479 + $0x40] sm:$0xff] %v2282
        %2331 = vst [vmem:[%s479 + $0x48] sm:$0xff] %v2283
        %2332 = vst [vmem:[%s479 + $0x50] sm:$0xff] %v2284
        %2333 = vst [vmem:[%s479 + $0x58] sm:$0xff] %v2285
        %2334 = vst [vmem:[%s479 + $0x60] sm:$0xff] %v2286
        %2335 = vst [vmem:[%s479 + $0x68] sm:$0xff] %v2287
        %2336 = vst [vmem:[%s479 + $0x70] sm:$0xff] %v2288
        %2337 = vst [vmem:[%s479 + $0x78] sm:$0xff] %v2289
        %2338 = vst [vmem:[%s479 + $0x80] sm:$0xff] %v2290
        %2339 = vst [vmem:[%s479 + $0x88] sm:$0xff] %v2291
        %2340 = vst [vmem:[%s479 + $0x90] sm:$0xff] %v2292
        %2341 = vst [vmem:[%s479 + $0x98] sm:$0xff] %v2293
        %2342 = vst [vmem:[%s479 + $0xa0] sm:$0xff] %v2294
        %2343 = vst [vmem:[%s479 + $0xa8] sm:$0xff] %v2295
        %2344 = vst [vmem:[%s479 + $0xb0] sm:$0xff] %v2296
        %2345 = vst [vmem:[%s479 + $0xb8] sm:$0xff] %v2297
        %2346 = vst [vmem:[%s479 + $0xc0] sm:$0xff] %v2298
        %2347 = vst [vmem:[%s479 + $0xc8] sm:$0xff] %v2299
        %2348 = vst [vmem:[%s479 + $0xd0] sm:$0xff] %v2300
        %2349 = vst [vmem:[%s479 + $0xd8] sm:$0xff] %v2301
        %2350 = vst [vmem:[%s479 + $0xe0] sm:$0xff] %v2302
        %2351 = vst [vmem:[%s479 + $0xe8] sm:$0xff] %v2303
        %2352 = vst [vmem:[%s479 + $0xf0] sm:$0xff] %v2304
        %2353 = vst [vmem:[%s479 + $0xf8] sm:$0xff] %v2305
        %2354 = vst [vmem:[%s479 + $0x100] sm:$0xff] %v2306
        %2355 = vst [vmem:[%s479 + $0x108] sm:$0xff] %v2307
        %2356 = vst [vmem:[%s479 + $0x110] sm:$0xff] %v2308
        %2357 = vst [vmem:[%s479 + $0x118] sm:$0xff] %v2309
        %2358 = vst [vmem:[%s479 + $0x120] sm:$0xff] %v2310
        %2359 = vst [vmem:[%s479 + $0x128] sm:$0xff] %v2311
        %2360 = vst [vmem:[%s479 + $0x130] sm:$0xff] %v2312
        %2361 = vst [vmem:[%s479 + $0x138] sm:$0xff] %v2313
        %2362 = vst [vmem:[%s479 + $0x140] sm:$0xff] %v2314
        %2363 = vst [vmem:[%s479 + $0x148] sm:$0xff] %v2315
        %2364 = vst [vmem:[%s479 + $0x150] sm:$0xff] %v2316
        %2365 = vst [vmem:[%s479 + $0x158] sm:$0xff] %v2317
        %2366 = vst [vmem:[%s479 + $0x160] sm:$0xff] %v2318
        %2367 = vst [vmem:[%s479 + $0x168] sm:$0xff] %v2319
        %2368 = vst [vmem:[%s479 + $0x170] sm:$0xff] %v2320
        %2369 = vst [vmem:[%s479 + $0x178] sm:$0xff] %v2321
        %2370 = vst [vmem:[%s486] sm:$0xf] %v1473
        %2371 = vst [vmem:[%s486 + $0x4] sm:$0xf] %v1474
        %2372 = vst [vmem:[%s486 + $0x8] sm:$0xf] %v1475
        %2373 = vst [vmem:[%s486 + $0xc] sm:$0xf] %v1476
        %2374 = vst [vmem:[%s486 + $0x10] sm:$0xf] %v1477
        %2375 = vst [vmem:[%s486 + $0x14] sm:$0xf] %v1478
        %2376 = vst [vmem:[%s486 + $0x18] sm:$0xf] %v1479
        %2377 = vst [vmem:[%s486 + $0x1c] sm:$0xf] %v1480
        %2378 = vst [vmem:[%s486 + $0x20] sm:$0xf] %v1481
        %2379 = vst [vmem:[%s486 + $0x24] sm:$0xf] %v1482
        %2380 = vst [vmem:[%s486 + $0x28] sm:$0xf] %v1483
        %2381 = vst [vmem:[%s486 + $0x2c] sm:$0xf] %v1484
        %2382 = vst [vmem:[%s486 + $0x30] sm:$0xf] %v1485
        %2383 = vst [vmem:[%s486 + $0x34] sm:$0xf] %v1486
        %2384 = vst [vmem:[%s486 + $0x38] sm:$0xf] %v1487
        %2385 = vst [vmem:[%s486 + $0x3c] sm:$0xf] %v1488
        %s2386 = sand.u32 %s236, 1
        %s2387 = scalar_lea.sflag [#allocation4], %s2386
        %s2388 = sand.u32 %s236, 1
        %s2389 = smul.addr %s2388, 384
        %s2390 = scalar_lea.vmem [#allocation14], %s2389
        %s2391 = sand.u32 %s262, 1
        %s2392 = scalar_lea.sflag [#allocation16], %s2391
        %s2393 = sand.u32 %s262, 1
        %s2394 = smul.addr %s2393, 64
        %s2395 = scalar_lea.vmem [#allocation15], %s2394
        // Predicated region
        $region85: #{tpu_custom_call.1} parent=55 // pred_check
          %p2396 = pneg %p246
        $region86: #{tpu_custom_call.1} parent=55 // pred_check_branch
          %2398 = sbr.rel (%p2396) target = $region88
        $region87: #{tpu_custom_call.1} parent=55 // pred_region
          %s2399 = smul.u32 16, %s34
          %2401 = vsyncadd %s2387, 0
          %s2402 = smul.addr %s2399, 6
          %s2403 = smul.addr %s2402, 4
          %s2404 = scalar_lea.hbm %s9, %s2403
          %s2405 = sshll.u32 %s2390, 4
          %s2406 = int_to_ptr.vmem [resolvable:$true] %s2405
          %s2407 = sshll.u32 %s2404, 4
          %s2408 = int_to_ptr.hbm [resolvable:$true] %s2407
          %2413 = dma.vmem_to_hbm [thread:$0]  %s2406, 6144, %s2408, %s2387, 384, 384, 24
        $region88: #{tpu_custom_call.1} parent=55 // pred_fallthru
          _
        // Predicated region
        $region89: #{tpu_custom_call.1} parent=55 // pred_check
          %p2414 = pneg %p272
        $region90: #{tpu_custom_call.1} parent=55 // pred_check_branch
          %2416 = sbr.rel (%p2414) target = $region92
        $region91: #{tpu_custom_call.1} parent=55 // pred_region
          %s2417 = smul.u32 16, %s34
          %2419 = vsyncadd %s2392, 0
          %s2420 = smul.addr %s2417, 4
          %s2421 = scalar_lea.hbm %s10, %s2420
          %s2422 = sshll.u32 %s2395, 4
          %s2423 = int_to_ptr.vmem [resolvable:$true] %s2422
          %s2424 = sshll.u32 %s2421, 4
          %s2425 = int_to_ptr.hbm [resolvable:$true] %s2424
          %2430 = dma.vmem_to_hbm [thread:$0]  %s2423, 1024, %s2425, %s2392, 64, 64, 4
        $region92: #{tpu_custom_call.1} parent=55 // pred_fallthru
          _
      $region56: #{tpu_custom_call.1} parent=5 // pred_fallthru
        _
      %p2431 = scmp.le.s32.totalorder 2, %s29
      // Predicated region
      $region93: #{tpu_custom_call.1} parent=5 // pred_check
        %p2432 = pneg %p2431
      $region94: #{tpu_custom_call.1} parent=5 // pred_check_branch
        %2434 = sbr.rel (%p2432) target = $region96
      $region95: #{tpu_custom_call.1} parent=5 // pred_region
        %s2435 = ssub.s32 %s29, 2
        // Predicated region
        $region97: #{tpu_custom_call.1} parent=95 // pred_check
          %p2436 = pneg %p252
        $region98: #{tpu_custom_call.1} parent=95 // pred_check_branch
          %2438 = sbr.rel (%p2436) target = $region100
        $region99: #{tpu_custom_call.1} parent=95 // pred_region
          %s2439 = sand.u32 %s237, 1
          %s2440 = scalar_lea.sflag [#allocation4], %s2439
          %s2441 = sand.u32 %s237, 1
          %s2442 = smul.addr %s2441, 384
          %s2443 = scalar_lea.vmem [#allocation14], %s2442
          %2445 = dma.done %s2440, 6144
        $region100: #{tpu_custom_call.1} parent=95 // pred_fallthru
          _
        // Predicated region
        $region101: #{tpu_custom_call.1} parent=95 // pred_check
          %p2446 = pneg %p278
        $region102: #{tpu_custom_call.1} parent=95 // pred_check_branch
          %2448 = sbr.rel (%p2446) target = $region104
        $region103: #{tpu_custom_call.1} parent=95 // pred_region
          %s2449 = sand.u32 %s263, 1
          %s2450 = scalar_lea.sflag [#allocation16], %s2449
          %s2451 = sand.u32 %s263, 1
          %s2452 = smul.addr %s2451, 64
          %s2453 = scalar_lea.vmem [#allocation15], %s2452
          %2455 = dma.done %s2450, 1024
        $region104: #{tpu_custom_call.1} parent=95 // pred_fallthru
          _
      $region96: #{tpu_custom_call.1} parent=5 // pred_fallthru
        _
    $region6: #{tpu_custom_call.1} parent=1 // loop_footer
      %s33 = sadd.s32 1, %s29
    $region7: #{tpu_custom_call.1} parent=1 // loop_footer_branch
      %28 = sbr.rel target = $region3
    $region8: #{tpu_custom_call.1} parent=1 // loop_exit
      _
    %2456 = vsyncpa [#allocation3], 1
    %s2457 = scalar_lea.sflag [#allocation3], 1
    %2458 = vsyncpa %s2457, 1
    %2459 = vsyncpa [#allocation6], 1
    %2460 = vsyncpa [#allocation9], 1
    %2461 = vsyncpa [#allocation12], 1
    %2462 = vsyncpa [#allocation4], 1
    %s2463 = scalar_lea.sflag [#allocation4], 1
    %2464 = vsyncpa %s2463, 1
    %2465 = vsyncpa [#allocation16], 1
    %s2466 = scalar_lea.sflag [#allocation16], 1
    %2467 = vsyncpa %s2466, 1

</llo_original>
